<compile_context>
chip_gen: v7x
topology: tpu7x:2x2x1
jax: 0.10.0
libtpu: 0.0.40
codegen_flags: <defaults>
</compile_context>

<pallas_src>
import functools
import math

import jax
import jax.numpy as jnp
import numpy as np
from jax import lax
from jax.experimental import pallas as pl
from jax.experimental.pallas import tpu as pltpu

# Small, TPU-friendly config (stands in for dim_clip = dim_gpt = 768 in the module).
DIM_CLIP = 128          # mapper_dim
DIM_V = 128             # gpt_embedding_size
NUM_HEADS = 8
DIM_SPLIT = DIM_V // NUM_HEADS
PREFIX_LEN = 7
SEQ_TOTAL = PREFIX_LEN + 1          # prefix + the single clip token (clip_x.unsqueeze(1))
LN_EPS = 1e-5
LEAKY_SLOPE = 0.01
NEG_INF = -1e30


def _layer_norm(x, w, b):
    mu = jnp.mean(x, axis=-1, keepdims=True)
    var = jnp.mean((x - mu) ** 2, axis=-1, keepdims=True)
    return (x - mu) * lax.rsqrt(var + LN_EPS) * w + b


def attention_mapper_kernel(clip_ref, pqkv_ref, wqkv_ref, wo_ref, p_ref,
                            bias_ref, hmask_ref, o_ref):
    """One grid step = b_tile batch elements.

    Slab row layout (m = b_tile * SEQ_TOTAL rows):
      rows [0, b_tile*PREFIX_LEN) : prefix positions, ordered (local_b, pos)
      rows [b_tile*PREFIX_LEN, m) : the clip token of each local_b
    p_ref rows: 0=bq 1=bk 2=bv 3=bo 4=ln1_w 5=ln1_b 6=ln2_w 7=ln2_b  (each (DIM_V,)).
    """
    cdt = wqkv_ref.dtype                                   # MXU input dtype (bf16 or f32)
    m = o_ref.shape[0]

    # QKV projection of the clip rows only; prefix rows were projected once on host.
    clip_qkv = jnp.dot(clip_ref[...], wqkv_ref[...],
                       preferred_element_type=jnp.float32)          # (b_tile, 3*DIM_V)
    qkv = jnp.concatenate([pqkv_ref[...], clip_qkv], axis=0)        # (m, 3*DIM_V) f32

    q = qkv[:, 0:DIM_V] + p_ref[0:1, :]                   # 128-aligned lane slices (free)
    k = qkv[:, DIM_V:2 * DIM_V] + p_ref[1:2, :]
    v = qkv[:, 2 * DIM_V:3 * DIM_V] + p_ref[2:3, :]

    scale = 1.0 / math.sqrt(DIM_V)    # reference scales by sqrt(dim_V), not head dim
    qc = (q * scale).astype(cdt)
    kc = k.astype(cdt)
    vc = v.astype(cdt)

    # Head-packed masked K / V, built once per step (mask is a resident input).
    hm = hmask_ref[...]                                             # (NUM_HEADS, DIM_V)
    k_packed = jnp.concatenate([kc * hm[h:h + 1, :] for h in range(NUM_HEADS)], axis=0)
    v_packed = jnp.concatenate([vc * hm[h:h + 1, :] for h in range(NUM_HEADS)], axis=0)

    # All 8 heads' scores in one MXU-filling NT matmul: (m, D) . (8m, D)^T -> (m, 8m).
    s_packed = lax.dot_general(qc, k_packed, (((1,), (1,)), ((), ())),
                               preferred_element_type=jnp.float32)

    bias = bias_ref[...]                   # (m, m) additive 0 / -1e30 batch block-diagonal
    p_blocks = []
    for h in range(NUM_HEADS):             # static unroll; static lane-aligned slices
        s = s_packed[:, h * m:(h + 1) * m] + bias
        s = s - jnp.max(s, axis=-1, keepdims=True)
        e = jnp.exp(s)
        inv = pl.reciprocal(jnp.sum(e, axis=-1, keepdims=True))      # exact reciprocal
        p_blocks.append((e * inv).astype(cdt))
    p_packed = jnp.concatenate(p_blocks, axis=1)                     # (m, 8m)

    # Residual + all heads' outputs in one matmul (K = 8m): O = Q + sum_h A_h (V*mask_h).
    o = q + jnp.dot(p_packed, v_packed, preferred_element_type=jnp.float32)

    # TODO(synk): F.dropout(p=0.5) (training-mode stochastic) treated as identity
    # (eval/inference semantics); could be added with pltpu.prng_random_bits if needed.
    o = _layer_norm(o, p_ref[4:5, :], p_ref[5:6, :])                 # layer_norm_1

    h2 = jnp.dot(o.astype(cdt), wo_ref[...], preferred_element_type=jnp.float32) \
        + p_ref[3:4, :]
    o = o + jnp.where(h2 >= 0, h2, LEAKY_SLOPE * h2)                 # + leaky_relu(...)

    o = _layer_norm(o, p_ref[6:7, :], p_ref[7:8, :])                 # layer_norm_2
    o_ref[...] = o.astype(o_ref.dtype)                               # full unmasked store


def _make_constants(b_tile, compute_dtype):
    """Host/numpy compile-time constants: batch block-diagonal bias + head lane mask."""
    m = b_tile * SEQ_TOTAL
    n_pref = b_tile * PREFIX_LEN
    row_batch = np.empty((m,), np.int32)
    row_batch[:n_pref] = np.arange(n_pref) // PREFIX_LEN
    row_batch[n_pref:] = np.arange(b_tile)
    bias = np.where(row_batch[:, None] == row_batch[None, :], 0.0, NEG_INF)
    bias = bias.astype(np.float32)
    hmask = (np.arange(DIM_V)[None, :] // DIM_SPLIT
             == np.arange(NUM_HEADS)[:, None]).astype(np.float32)
    return jnp.asarray(bias), jnp.asarray(hmask, dtype=compute_dtype)


@functools.partial(jax.jit, static_argnames=("compute_dtype", "out_dtype"))
def attention_mapper_forward(clip_x, params, compute_dtype=jnp.bfloat16, out_dtype=None):
    """clip_x: (B, dim_clip) 'encoder_out' features.  Returns (B, prefix_len, dim_V)."""
    if out_dtype is None:
        out_dtype = compute_dtype
    (prefix, wq, bq, wk, bk, wv, bv, wo, bo, ln1w, ln1b, ln2w, ln2b) = params

    batch = clip_x.shape[0]
    b_tile = 16 if batch > 16 else 8          # small batches keep >=2 grid steps (v7x 2 TCs)
    m = b_tile * SEQ_TOTAL
    n_pref = b_tile * PREFIX_LEN
    b_pad = ((batch + b_tile - 1) // b_tile) * b_tile
    n_steps = b_pad // b_tile

    # Fused, pre-transposed weights (host, once); bf16 MXU inputs by default.
    wqkv_t32 = jnp.concatenate([wq, wk, wv], axis=0).T               # (DIM_CLIP, 3*DIM_V)
    wqkv_t = wqkv_t32.astype(compute_dtype)
    wo_t = wo.T.astype(compute_dtype)
    p_small = jnp.stack([bq, bk, bv, bo, ln1w, ln1b, ln2w, ln2b], axis=0).astype(jnp.float32)

    # Prefix rows are identical for every batch element: project them ONCE on the host
    # (f32, bias added later in-kernel) and pass the tiled result as a resident input.
    prefix_qkv = prefix.astype(jnp.float32) @ wqkv_t32               # (PREFIX_LEN, 3*DIM_V)
    prefix_qkv_tiled = jnp.tile(prefix_qkv, (b_tile, 1))             # (n_pref, 3*DIM_V)

    bias, hmask = _make_constants(b_tile, compute_dtype)

    clip_in = clip_x.astype(jnp.float32).astype(compute_dtype)       # halves input DMA (bf16)
    if b_pad != batch:
        clip_in = jnp.pad(clip_in, ((0, b_pad - batch), (0, 0)))

    out_flat = pl.pallas_call(
        attention_mapper_kernel,
        out_shape=jax.ShapeDtypeStruct((n_steps * m, DIM_V), out_dtype),
        grid=(n_steps,),
        in_specs=[
            pl.BlockSpec((b_tile, DIM_CLIP), lambda b: (b, 0)),      # clip rows (per step)
            pl.BlockSpec((n_pref, 3 * DIM_V), lambda b: (0, 0)),     # prefix QKV (resident)
            pl.BlockSpec((DIM_CLIP, 3 * DIM_V), lambda b: (0, 0)),   # fused Wqkv.T
            pl.BlockSpec((DIM_V, DIM_V), lambda b: (0, 0)),          # Wo.T
            pl.BlockSpec((8, DIM_V), lambda b: (0, 0)),              # packed small params
            pl.BlockSpec((m, m), lambda b: (0, 0)),                  # additive batch mask
            pl.BlockSpec((NUM_HEADS, DIM_V), lambda b: (0, 0)),      # head lane masks
        ],
        out_specs=pl.BlockSpec((m, DIM_V), lambda b: (b, 0)),
        compiler_params=pltpu.CompilerParams(dimension_semantics=("parallel",)),
    )(clip_in, prefix_qkv_tiled, wqkv_t, wo_t, p_small, bias, hmask)

    # Rows [0, n_pref) of each step are the prefix-position outputs (ordered local_b, pos);
    # the trailing clip-token rows are the O[:, prefix_len:] part the reference discards.
    out = out_flat.reshape(n_steps, m, DIM_V)[:, :n_pref, :]
    out = out.reshape(b_pad, PREFIX_LEN, DIM_V)[:batch]
    return out


def attention_mapper_ref(clip_x, params):
    """Pure-JAX reference mirroring the PyTorch AttentionMapper.forward (eval mode)."""
    (prefix, wq, bq, wk, bk, wv, bv, wo, bo, ln1w, ln1b, ln2w, ln2b) = params
    x = clip_x.astype(jnp.float32)[:, None, :]
    batch = x.shape[0]
    xp = jnp.concatenate([jnp.broadcast_to(prefix[None], (batch,) + prefix.shape), x], 1)
    Q = xp @ wq.T + bq
    K = xp @ wk.T + bk
    V = xp @ wv.T + bv
    ds = DIM_V // NUM_HEADS
    rs = lambda a: a.reshape(batch, -1, NUM_HEADS, ds).transpose(0, 2, 1, 3)
    Qh, Kh, Vh = rs(Q), rs(K), rs(V)
    A = jax.nn.softmax(jnp.einsum('bhqd,bhkd->bhqk', Qh, Kh) / math.sqrt(DIM_V), axis=-1)
    O = (Qh + jnp.einsum('bhqk,bhkd->bhqd', A, Vh)).transpose(0, 2, 1, 3).reshape(batch, -1, DIM_V)
    O = _layer_norm(O, ln1w, ln1b)
    O = O + jax.nn.leaky_relu(O @ wo.T + bo, LEAKY_SLOPE)
    O = _layer_norm(O, ln2w, ln2b)
    return O[:, :PREFIX_LEN]


def init_mapper_params(key):
    """Deterministic parameters matching AttentionMapper.__init__ shapes."""
    ks = jax.random.split(key, 5)

    def xavier(k, shape):
        fan_out, fan_in = shape
        bound = math.sqrt(6.0 / (fan_in + fan_out))
        return jax.random.uniform(k, shape, jnp.float32, -bound, bound)

    prefix = jax.random.normal(ks[0], (PREFIX_LEN, DIM_CLIP), jnp.float32)
    wq = xavier(ks[1], (DIM_V, DIM_CLIP)); bq = jnp.zeros((DIM_V,), jnp.float32)
    wk = xavier(ks[2], (DIM_V, DIM_CLIP)); bk = jnp.zeros((DIM_V,), jnp.float32)
    wv = xavier(ks[3], (DIM_V, DIM_CLIP)); bv = jnp.zeros((DIM_V,), jnp.float32)
    wo = xavier(ks[4], (DIM_V, DIM_V));    bo = jnp.zeros((DIM_V,), jnp.float32)
    ln1w = jnp.ones((DIM_V,), jnp.float32); ln1b = jnp.zeros((DIM_V,), jnp.float32)
    ln2w = jnp.ones((DIM_V,), jnp.float32); ln2b = jnp.zeros((DIM_V,), jnp.float32)
    return (prefix, wq, bq, wk, bk, wv, bv, wo, bo, ln1w, ln1b, ln2w, ln2b)


def meta_learner_forward(clip_features, tokens, mapper_params, embed_table):
    """MetaLearner.forward glue around the Pallas mapper kernel.

    clip_features stands in for feature_extract(ecg)['encoder_out'].
    """
    # TODO(synk): pretrained ECG feature extractor (hydra_main) has no Pallas equivalent.
    proj_clip = attention_mapper_forward(clip_features, mapper_params)       # Pallas kernel
    tokens_embed = embed_table[tokens]                                       # gpt input embeddings
    embedding_cat = jnp.concatenate(
        [proj_clip.astype(tokens_embed.dtype), tokens_embed], axis=1)
    # TODO(synk): frozen GPT causal-LM (self.gpt) and nucleus-sampling text generation
    # (TextSampler.generate) are external pretrained models / host-side loops.
    return embedding_cat


if __name__ == "__main__":
    key = jax.random.PRNGKey(0)
    k_params, k_clip, k_tok, k_emb, k_big = jax.random.split(key, 5)

    params = init_mapper_params(k_params)
    batch, seq = 2, 8
    clip_x = jax.random.normal(k_clip, (batch, DIM_CLIP), jnp.float32)
    tokens = jax.random.randint(k_tok, (batch, seq), 0, 100)
    embed_table = 0.02 * jax.random.normal(k_emb, (100, DIM_V), jnp.float32)

    out = jax.block_until_ready(meta_learner_forward(clip_x, tokens, params, embed_table))
    assert out.shape == (batch, PREFIX_LEN + seq, DIM_V)

    ref = attention_mapper_ref(clip_x, params)

    # Default path: bf16 MXU inputs, f32 accumulation / softmax / LayerNorm, bf16 output.
    got_bf16 = jax.block_until_ready(attention_mapper_forward(clip_x, params))
    np.testing.assert_allclose(np.asarray(got_bf16.astype(jnp.float32)), np.asarray(ref),
                               rtol=5e-2, atol=5e-2)

    # Full f32 path (tighter check of the kernel math).
    got_f32 = jax.block_until_ready(
        attention_mapper_forward(clip_x, params, compute_dtype=jnp.float32,
                                 out_dtype=jnp.float32))
    np.testing.assert_allclose(np.asarray(got_f32), np.asarray(ref), rtol=5e-3, atol=5e-3)

    # Larger, non-multiple batch: exercises b_tile=16, a 2-step grid, and batch padding.
    clip_big = jax.random.normal(k_big, (20, DIM_CLIP), jnp.float32)
    ref_big = attention_mapper_ref(clip_big, params)
    got_big = jax.block_until_ready(attention_mapper_forward(clip_big, params))
    np.testing.assert_allclose(np.asarray(got_big.astype(jnp.float32)), np.asarray(ref_big),
                               rtol=5e-2, atol=5e-2)

    print("KERNEL_OK")
</pallas_src>

<mosaic_0001>
module attributes {stable_mosaic.version = 11 : i64} {
  func.func @attention_mapper_kernel(%arg0: i32, %arg1: memref<8x128xbf16, #tpu.memory_space<vmem>>, %arg2: memref<56x384xf32, #tpu.memory_space<vmem>>, %arg3: memref<128x384xbf16, #tpu.memory_space<vmem>>, %arg4: memref<128x128xbf16, #tpu.memory_space<vmem>>, %arg5: memref<8x128xf32, #tpu.memory_space<vmem>>, %arg6: memref<64x64xf32, #tpu.memory_space<vmem>>, %arg7: memref<8x128xbf16, #tpu.memory_space<vmem>>, %arg8: memref<64x128xbf16, #tpu.memory_space<vmem>>) attributes {dimension_semantics = [#tpu.dimension_semantics<parallel>], iteration_bounds = array<i64: 1>, scalar_prefetch = 0 : i64, scratch_operands = 0 : i64, tpu.core_type = #tpu.core_type<tc>, window_params = [{transform_indices = @transform_0, window_bounds = array<i64: 8, 128>}, {pipeline_mode = #tpu.pipeline_mode<synchronous>, transform_indices = @transform_1, window_bounds = array<i64: 56, 384>}, {pipeline_mode = #tpu.pipeline_mode<synchronous>, transform_indices = @transform_2, window_bounds = array<i64: 128, 384>}, {pipeline_mode = #tpu.pipeline_mode<synchronous>, transform_indices = @transform_3, window_bounds = array<i64: 128, 128>}, {pipeline_mode = #tpu.pipeline_mode<synchronous>, transform_indices = @transform_4, window_bounds = array<i64: 8, 128>}, {pipeline_mode = #tpu.pipeline_mode<synchronous>, transform_indices = @transform_5, window_bounds = array<i64: 64, 64>}, {pipeline_mode = #tpu.pipeline_mode<synchronous>, transform_indices = @transform_6, window_bounds = array<i64: 8, 128>}, {transform_indices = @transform_7, window_bounds = array<i64: 64, 128>}]} {
    %c0 = arith.constant 0 : index
    %c0_0 = arith.constant 0 : index
    %0 = vector.load %arg1[%c0, %c0_0] : memref<8x128xbf16, #tpu.memory_space<vmem>>, vector<8x128xbf16>
    %c0_1 = arith.constant 0 : index
    %c0_2 = arith.constant 0 : index
    %1 = vector.load %arg3[%c0_1, %c0_2] : memref<128x384xbf16, #tpu.memory_space<vmem>>, vector<128x384xbf16>
    %cst = arith.constant dense<0.000000e+00> : vector<8x384xf32>
    %2 = tpu.matmul %0, %1, %cst {dimension_numbers = #tpu.dot_dimension_numbers<[1], [0], [0], [1], [0, 0, 1, 1], [], []>} : vector<8x128xbf16>, vector<128x384xbf16>, vector<8x384xf32> -> vector<8x384xf32>
    %c0_3 = arith.constant 0 : index
    %c0_4 = arith.constant 0 : index
    %3 = vector.load %arg2[%c0_3, %c0_4] : memref<56x384xf32, #tpu.memory_space<vmem>>, vector<56x384xf32>
    %4 = tpu.concatenate %3, %2 in 0 : vector<56x384xf32>, vector<8x384xf32> -> vector<64x384xf32>
    %5 = vector.extract_strided_slice %4 {offsets = [0, 0], sizes = [64, 128], strides = [1, 1]} : vector<64x384xf32> to vector<64x128xf32>
    %c0_5 = arith.constant 0 : index
    %c0_6 = arith.constant 0 : index
    %6 = vector.load %arg5[%c0_5, %c0_6] : memref<8x128xf32, #tpu.memory_space<vmem>>, vector<1x128xf32>
    %7 = vector.broadcast %6 : vector<1x128xf32> to vector<64x128xf32>
    %8 = arith.addf %5, %7 : vector<64x128xf32>
    %9 = vector.extract_strided_slice %4 {offsets = [0, 128], sizes = [64, 128], strides = [1, 1]} : vector<64x384xf32> to vector<64x128xf32>
    %c1 = arith.constant 1 : index
    %c0_7 = arith.constant 0 : index
    %10 = vector.load %arg5[%c1, %c0_7] : memref<8x128xf32, #tpu.memory_space<vmem>>, vector<1x128xf32>
    %11 = vector.broadcast %10 : vector<1x128xf32> to vector<64x128xf32>
    %12 = arith.addf %9, %11 : vector<64x128xf32>
    %13 = vector.extract_strided_slice %4 {offsets = [0, 256], sizes = [64, 128], strides = [1, 1]} : vector<64x384xf32> to vector<64x128xf32>
    %c2 = arith.constant 2 : index
    %c0_8 = arith.constant 0 : index
    %14 = vector.load %arg5[%c2, %c0_8] : memref<8x128xf32, #tpu.memory_space<vmem>>, vector<1x128xf32>
    %15 = vector.broadcast %14 : vector<1x128xf32> to vector<64x128xf32>
    %16 = arith.addf %13, %15 : vector<64x128xf32>
    %cst_9 = arith.constant 0.0883883461 : f32
    %17 = vector.broadcast %cst_9 : f32 to vector<64x128xf32>
    %18 = arith.mulf %8, %17 : vector<64x128xf32>
    %19 = arith.truncf %18 : vector<64x128xf32> to vector<64x128xbf16>
    %20 = arith.truncf %12 : vector<64x128xf32> to vector<64x128xbf16>
    %21 = arith.truncf %16 : vector<64x128xf32> to vector<64x128xbf16>
    %c0_10 = arith.constant 0 : index
    %c0_11 = arith.constant 0 : index
    %22 = vector.load %arg7[%c0_10, %c0_11] : memref<8x128xbf16, #tpu.memory_space<vmem>>, vector<8x128xbf16>
    %23 = vector.extract_strided_slice %22 {offsets = [0, 0], sizes = [1, 128], strides = [1, 1]} : vector<8x128xbf16> to vector<1x128xbf16>
    %24 = vector.broadcast %23 : vector<1x128xbf16> to vector<64x128xbf16>
    %25 = arith.mulf %20, %24 : vector<64x128xbf16>
    %26 = vector.extract_strided_slice %22 {offsets = [1, 0], sizes = [1, 128], strides = [1, 1]} : vector<8x128xbf16> to vector<1x128xbf16>
    %27 = vector.broadcast %26 : vector<1x128xbf16> to vector<64x128xbf16>
    %28 = arith.mulf %20, %27 : vector<64x128xbf16>
    %29 = vector.extract_strided_slice %22 {offsets = [2, 0], sizes = [1, 128], strides = [1, 1]} : vector<8x128xbf16> to vector<1x128xbf16>
    %30 = vector.broadcast %29 : vector<1x128xbf16> to vector<64x128xbf16>
    %31 = arith.mulf %20, %30 : vector<64x128xbf16>
    %32 = vector.extract_strided_slice %22 {offsets = [3, 0], sizes = [1, 128], strides = [1, 1]} : vector<8x128xbf16> to vector<1x128xbf16>
    %33 = vector.broadcast %32 : vector<1x128xbf16> to vector<64x128xbf16>
    %34 = arith.mulf %20, %33 : vector<64x128xbf16>
    %35 = vector.extract_strided_slice %22 {offsets = [4, 0], sizes = [1, 128], strides = [1, 1]} : vector<8x128xbf16> to vector<1x128xbf16>
    %36 = vector.broadcast %35 : vector<1x128xbf16> to vector<64x128xbf16>
    %37 = arith.mulf %20, %36 : vector<64x128xbf16>
    %38 = vector.extract_strided_slice %22 {offsets = [5, 0], sizes = [1, 128], strides = [1, 1]} : vector<8x128xbf16> to vector<1x128xbf16>
    %39 = vector.broadcast %38 : vector<1x128xbf16> to vector<64x128xbf16>
    %40 = arith.mulf %20, %39 : vector<64x128xbf16>
    %41 = vector.extract_strided_slice %22 {offsets = [6, 0], sizes = [1, 128], strides = [1, 1]} : vector<8x128xbf16> to vector<1x128xbf16>
    %42 = vector.broadcast %41 : vector<1x128xbf16> to vector<64x128xbf16>
    %43 = arith.mulf %20, %42 : vector<64x128xbf16>
    %44 = vector.extract_strided_slice %22 {offsets = [7, 0], sizes = [1, 128], strides = [1, 1]} : vector<8x128xbf16> to vector<1x128xbf16>
    %45 = vector.broadcast %44 : vector<1x128xbf16> to vector<64x128xbf16>
    %46 = arith.mulf %20, %45 : vector<64x128xbf16>
    %47 = tpu.concatenate %25, %28, %31, %34, %37, %40, %43, %46 in 0 : vector<64x128xbf16>, vector<64x128xbf16>, vector<64x128xbf16>, vector<64x128xbf16>, vector<64x128xbf16>, vector<64x128xbf16>, vector<64x128xbf16>, vector<64x128xbf16> -> vector<512x128xbf16>
    %48 = vector.extract_strided_slice %22 {offsets = [0, 0], sizes = [1, 128], strides = [1, 1]} : vector<8x128xbf16> to vector<1x128xbf16>
    %49 = vector.broadcast %48 : vector<1x128xbf16> to vector<64x128xbf16>
    %50 = arith.mulf %21, %49 : vector<64x128xbf16>
    %51 = vector.extract_strided_slice %22 {offsets = [1, 0], sizes = [1, 128], strides = [1, 1]} : vector<8x128xbf16> to vector<1x128xbf16>
    %52 = vector.broadcast %51 : vector<1x128xbf16> to vector<64x128xbf16>
    %53 = arith.mulf %21, %52 : vector<64x128xbf16>
    %54 = vector.extract_strided_slice %22 {offsets = [2, 0], sizes = [1, 128], strides = [1, 1]} : vector<8x128xbf16> to vector<1x128xbf16>
    %55 = vector.broadcast %54 : vector<1x128xbf16> to vector<64x128xbf16>
    %56 = arith.mulf %21, %55 : vector<64x128xbf16>
    %57 = vector.extract_strided_slice %22 {offsets = [3, 0], sizes = [1, 128], strides = [1, 1]} : vector<8x128xbf16> to vector<1x128xbf16>
    %58 = vector.broadcast %57 : vector<1x128xbf16> to vector<64x128xbf16>
    %59 = arith.mulf %21, %58 : vector<64x128xbf16>
    %60 = vector.extract_strided_slice %22 {offsets = [4, 0], sizes = [1, 128], strides = [1, 1]} : vector<8x128xbf16> to vector<1x128xbf16>
    %61 = vector.broadcast %60 : vector<1x128xbf16> to vector<64x128xbf16>
    %62 = arith.mulf %21, %61 : vector<64x128xbf16>
    %63 = vector.extract_strided_slice %22 {offsets = [5, 0], sizes = [1, 128], strides = [1, 1]} : vector<8x128xbf16> to vector<1x128xbf16>
    %64 = vector.broadcast %63 : vector<1x128xbf16> to vector<64x128xbf16>
    %65 = arith.mulf %21, %64 : vector<64x128xbf16>
    %66 = vector.extract_strided_slice %22 {offsets = [6, 0], sizes = [1, 128], strides = [1, 1]} : vector<8x128xbf16> to vector<1x128xbf16>
    %67 = vector.broadcast %66 : vector<1x128xbf16> to vector<64x128xbf16>
    %68 = arith.mulf %21, %67 : vector<64x128xbf16>
    %69 = vector.extract_strided_slice %22 {offsets = [7, 0], sizes = [1, 128], strides = [1, 1]} : vector<8x128xbf16> to vector<1x128xbf16>
    %70 = vector.broadcast %69 : vector<1x128xbf16> to vector<64x128xbf16>
    %71 = arith.mulf %21, %70 : vector<64x128xbf16>
    %72 = tpu.concatenate %50, %53, %56, %59, %62, %65, %68, %71 in 0 : vector<64x128xbf16>, vector<64x128xbf16>, vector<64x128xbf16>, vector<64x128xbf16>, vector<64x128xbf16>, vector<64x128xbf16>, vector<64x128xbf16>, vector<64x128xbf16> -> vector<512x128xbf16>
    %cst_12 = arith.constant dense<0.000000e+00> : vector<64x512xf32>
    %73 = tpu.matmul %19, %47, %cst_12 {dimension_numbers = #tpu.dot_dimension_numbers<[1], [1], [0], [0], [0, 0, 1, 0], [], []>} : vector<64x128xbf16>, vector<512x128xbf16>, vector<64x512xf32> -> vector<64x512xf32>
    %c0_13 = arith.constant 0 : index
    %c0_14 = arith.constant 0 : index
    %74 = vector.load %arg6[%c0_13, %c0_14] : memref<64x64xf32, #tpu.memory_space<vmem>>, vector<64x64xf32>
    %75 = vector.extract_strided_slice %73 {offsets = [0, 0], sizes = [64, 64], strides = [1, 1]} : vector<64x512xf32> to vector<64x64xf32>
    %76 = arith.addf %75, %74 : vector<64x64xf32>
    %cst_15 = arith.constant dense<0xFF800000> : vector<64xf32>
    %77 = vector.multi_reduction <maximumf>, %76, %cst_15 [1] : vector<64x64xf32> to vector<64xf32>
    %78 = vector.shape_cast %77 : vector<64xf32> to vector<64x1xf32>
    %79 = vector.broadcast %78 : vector<64x1xf32> to vector<64x64xf32>
    %80 = arith.subf %76, %79 : vector<64x64xf32>
    %81 = math.exp %80 : vector<64x64xf32>
    %cst_16 = arith.constant dense<0.000000e+00> : vector<64xf32>
    %82 = vector.multi_reduction <add>, %81, %cst_16 [1] : vector<64x64xf32> to vector<64xf32>
    %83 = vector.shape_cast %82 : vector<64xf32> to vector<64x1xf32>
    %84 = tpu.reciprocal %83 : vector<64x1xf32> -> vector<64x1xf32>
    %85 = vector.broadcast %84 : vector<64x1xf32> to vector<64x64xf32>
    %86 = arith.mulf %81, %85 : vector<64x64xf32>
    %87 = arith.truncf %86 : vector<64x64xf32> to vector<64x64xbf16>
    %88 = vector.extract_strided_slice %73 {offsets = [0, 64], sizes = [64, 64], strides = [1, 1]} : vector<64x512xf32> to vector<64x64xf32>
    %89 = arith.addf %88, %74 : vector<64x64xf32>
    %cst_17 = arith.constant dense<0xFF800000> : vector<64xf32>
    %90 = vector.multi_reduction <maximumf>, %89, %cst_17 [1] : vector<64x64xf32> to vector<64xf32>
    %91 = vector.shape_cast %90 : vector<64xf32> to vector<64x1xf32>
    %92 = vector.broadcast %91 : vector<64x1xf32> to vector<64x64xf32>
    %93 = arith.subf %89, %92 : vector<64x64xf32>
    %94 = math.exp %93 : vector<64x64xf32>
    %cst_18 = arith.constant dense<0.000000e+00> : vector<64xf32>
    %95 = vector.multi_reduction <add>, %94, %cst_18 [1] : vector<64x64xf32> to vector<64xf32>
    %96 = vector.shape_cast %95 : vector<64xf32> to vector<64x1xf32>
    %97 = tpu.reciprocal %96 : vector<64x1xf32> -> vector<64x1xf32>
    %98 = vector.broadcast %97 : vector<64x1xf32> to vector<64x64xf32>
    %99 = arith.mulf %94, %98 : vector<64x64xf32>
    %100 = arith.truncf %99 : vector<64x64xf32> to vector<64x64xbf16>
    %101 = vector.extract_strided_slice %73 {offsets = [0, 128], sizes = [64, 64], strides = [1, 1]} : vector<64x512xf32> to vector<64x64xf32>
    %102 = arith.addf %101, %74 : vector<64x64xf32>
    %cst_19 = arith.constant dense<0xFF800000> : vector<64xf32>
    %103 = vector.multi_reduction <maximumf>, %102, %cst_19 [1] : vector<64x64xf32> to vector<64xf32>
    %104 = vector.shape_cast %103 : vector<64xf32> to vector<64x1xf32>
    %105 = vector.broadcast %104 : vector<64x1xf32> to vector<64x64xf32>
    %106 = arith.subf %102, %105 : vector<64x64xf32>
    %107 = math.exp %106 : vector<64x64xf32>
    %cst_20 = arith.constant dense<0.000000e+00> : vector<64xf32>
    %108 = vector.multi_reduction <add>, %107, %cst_20 [1] : vector<64x64xf32> to vector<64xf32>
    %109 = vector.shape_cast %108 : vector<64xf32> to vector<64x1xf32>
    %110 = tpu.reciprocal %109 : vector<64x1xf32> -> vector<64x1xf32>
    %111 = vector.broadcast %110 : vector<64x1xf32> to vector<64x64xf32>
    %112 = arith.mulf %107, %111 : vector<64x64xf32>
    %113 = arith.truncf %112 : vector<64x64xf32> to vector<64x64xbf16>
    %114 = vector.extract_strided_slice %73 {offsets = [0, 192], sizes = [64, 64], strides = [1, 1]} : vector<64x512xf32> to vector<64x64xf32>
    %115 = arith.addf %114, %74 : vector<64x64xf32>
    %cst_21 = arith.constant dense<0xFF800000> : vector<64xf32>
    %116 = vector.multi_reduction <maximumf>, %115, %cst_21 [1] : vector<64x64xf32> to vector<64xf32>
    %117 = vector.shape_cast %116 : vector<64xf32> to vector<64x1xf32>
    %118 = vector.broadcast %117 : vector<64x1xf32> to vector<64x64xf32>
    %119 = arith.subf %115, %118 : vector<64x64xf32>
    %120 = math.exp %119 : vector<64x64xf32>
    %cst_22 = arith.constant dense<0.000000e+00> : vector<64xf32>
    %121 = vector.multi_reduction <add>, %120, %cst_22 [1] : vector<64x64xf32> to vector<64xf32>
    %122 = vector.shape_cast %121 : vector<64xf32> to vector<64x1xf32>
    %123 = tpu.reciprocal %122 : vector<64x1xf32> -> vector<64x1xf32>
    %124 = vector.broadcast %123 : vector<64x1xf32> to vector<64x64xf32>
    %125 = arith.mulf %120, %124 : vector<64x64xf32>
    %126 = arith.truncf %125 : vector<64x64xf32> to vector<64x64xbf16>
    %127 = vector.extract_strided_slice %73 {offsets = [0, 256], sizes = [64, 64], strides = [1, 1]} : vector<64x512xf32> to vector<64x64xf32>
    %128 = arith.addf %127, %74 : vector<64x64xf32>
    %cst_23 = arith.constant dense<0xFF800000> : vector<64xf32>
    %129 = vector.multi_reduction <maximumf>, %128, %cst_23 [1] : vector<64x64xf32> to vector<64xf32>
    %130 = vector.shape_cast %129 : vector<64xf32> to vector<64x1xf32>
    %131 = vector.broadcast %130 : vector<64x1xf32> to vector<64x64xf32>
    %132 = arith.subf %128, %131 : vector<64x64xf32>
    %133 = math.exp %132 : vector<64x64xf32>
    %cst_24 = arith.constant dense<0.000000e+00> : vector<64xf32>
    %134 = vector.multi_reduction <add>, %133, %cst_24 [1] : vector<64x64xf32> to vector<64xf32>
    %135 = vector.shape_cast %134 : vector<64xf32> to vector<64x1xf32>
    %136 = tpu.reciprocal %135 : vector<64x1xf32> -> vector<64x1xf32>
    %137 = vector.broadcast %136 : vector<64x1xf32> to vector<64x64xf32>
    %138 = arith.mulf %133, %137 : vector<64x64xf32>
    %139 = arith.truncf %138 : vector<64x64xf32> to vector<64x64xbf16>
    %140 = vector.extract_strided_slice %73 {offsets = [0, 320], sizes = [64, 64], strides = [1, 1]} : vector<64x512xf32> to vector<64x64xf32>
    %141 = arith.addf %140, %74 : vector<64x64xf32>
    %cst_25 = arith.constant dense<0xFF800000> : vector<64xf32>
    %142 = vector.multi_reduction <maximumf>, %141, %cst_25 [1] : vector<64x64xf32> to vector<64xf32>
    %143 = vector.shape_cast %142 : vector<64xf32> to vector<64x1xf32>
    %144 = vector.broadcast %143 : vector<64x1xf32> to vector<64x64xf32>
    %145 = arith.subf %141, %144 : vector<64x64xf32>
    %146 = math.exp %145 : vector<64x64xf32>
    %cst_26 = arith.constant dense<0.000000e+00> : vector<64xf32>
    %147 = vector.multi_reduction <add>, %146, %cst_26 [1] : vector<64x64xf32> to vector<64xf32>
    %148 = vector.shape_cast %147 : vector<64xf32> to vector<64x1xf32>
    %149 = tpu.reciprocal %148 : vector<64x1xf32> -> vector<64x1xf32>
    %150 = vector.broadcast %149 : vector<64x1xf32> to vector<64x64xf32>
    %151 = arith.mulf %146, %150 : vector<64x64xf32>
    %152 = arith.truncf %151 : vector<64x64xf32> to vector<64x64xbf16>
    %153 = vector.extract_strided_slice %73 {offsets = [0, 384], sizes = [64, 64], strides = [1, 1]} : vector<64x512xf32> to vector<64x64xf32>
    %154 = arith.addf %153, %74 : vector<64x64xf32>
    %cst_27 = arith.constant dense<0xFF800000> : vector<64xf32>
    %155 = vector.multi_reduction <maximumf>, %154, %cst_27 [1] : vector<64x64xf32> to vector<64xf32>
    %156 = vector.shape_cast %155 : vector<64xf32> to vector<64x1xf32>
    %157 = vector.broadcast %156 : vector<64x1xf32> to vector<64x64xf32>
    %158 = arith.subf %154, %157 : vector<64x64xf32>
    %159 = math.exp %158 : vector<64x64xf32>
    %cst_28 = arith.constant dense<0.000000e+00> : vector<64xf32>
    %160 = vector.multi_reduction <add>, %159, %cst_28 [1] : vector<64x64xf32> to vector<64xf32>
    %161 = vector.shape_cast %160 : vector<64xf32> to vector<64x1xf32>
    %162 = tpu.reciprocal %161 : vector<64x1xf32> -> vector<64x1xf32>
    %163 = vector.broadcast %162 : vector<64x1xf32> to vector<64x64xf32>
    %164 = arith.mulf %159, %163 : vector<64x64xf32>
    %165 = arith.truncf %164 : vector<64x64xf32> to vector<64x64xbf16>
    %166 = vector.extract_strided_slice %73 {offsets = [0, 448], sizes = [64, 64], strides = [1, 1]} : vector<64x512xf32> to vector<64x64xf32>
    %167 = arith.addf %166, %74 : vector<64x64xf32>
    %cst_29 = arith.constant dense<0xFF800000> : vector<64xf32>
    %168 = vector.multi_reduction <maximumf>, %167, %cst_29 [1] : vector<64x64xf32> to vector<64xf32>
    %169 = vector.shape_cast %168 : vector<64xf32> to vector<64x1xf32>
    %170 = vector.broadcast %169 : vector<64x1xf32> to vector<64x64xf32>
    %171 = arith.subf %167, %170 : vector<64x64xf32>
    %172 = math.exp %171 : vector<64x64xf32>
    %cst_30 = arith.constant dense<0.000000e+00> : vector<64xf32>
    %173 = vector.multi_reduction <add>, %172, %cst_30 [1] : vector<64x64xf32> to vector<64xf32>
    %174 = vector.shape_cast %173 : vector<64xf32> to vector<64x1xf32>
    %175 = tpu.reciprocal %174 : vector<64x1xf32> -> vector<64x1xf32>
    %176 = vector.broadcast %175 : vector<64x1xf32> to vector<64x64xf32>
    %177 = arith.mulf %172, %176 : vector<64x64xf32>
    %178 = arith.truncf %177 : vector<64x64xf32> to vector<64x64xbf16>
    %179 = tpu.concatenate %87, %100, %113, %126, %139, %152, %165, %178 in 1 : vector<64x64xbf16>, vector<64x64xbf16>, vector<64x64xbf16>, vector<64x64xbf16>, vector<64x64xbf16>, vector<64x64xbf16>, vector<64x64xbf16>, vector<64x64xbf16> -> vector<64x512xbf16>
    %cst_31 = arith.constant dense<0.000000e+00> : vector<64x128xf32>
    %180 = tpu.matmul %179, %72, %cst_31 {dimension_numbers = #tpu.dot_dimension_numbers<[1], [0], [0], [1], [0, 0, 1, 1], [], []>} : vector<64x512xbf16>, vector<512x128xbf16>, vector<64x128xf32> -> vector<64x128xf32>
    %181 = arith.addf %8, %180 : vector<64x128xf32>
    %c4 = arith.constant 4 : index
    %c0_32 = arith.constant 0 : index
    %182 = vector.load %arg5[%c4, %c0_32] : memref<8x128xf32, #tpu.memory_space<vmem>>, vector<1x128xf32>
    %c5 = arith.constant 5 : index
    %c0_33 = arith.constant 0 : index
    %183 = vector.load %arg5[%c5, %c0_33] : memref<8x128xf32, #tpu.memory_space<vmem>>, vector<1x128xf32>
    %cst_34 = arith.constant dense<0.000000e+00> : vector<64xf32>
    %184 = vector.multi_reduction <add>, %181, %cst_34 [1] : vector<64x128xf32> to vector<64xf32>
    %185 = vector.shape_cast %184 : vector<64xf32> to vector<64x1xf32>
    %cst_35 = arith.constant 1.280000e+02 : f32
    %186 = vector.broadcast %cst_35 : f32 to vector<64x1xf32>
    %187 = arith.divf %185, %186 : vector<64x1xf32>
    %188 = vector.broadcast %187 : vector<64x1xf32> to vector<64x128xf32>
    %189 = arith.subf %181, %188 : vector<64x128xf32>
    %190 = arith.mulf %189, %189 : vector<64x128xf32>
    %cst_36 = arith.constant dense<0.000000e+00> : vector<64xf32>
    %191 = vector.multi_reduction <add>, %190, %cst_36 [1] : vector<64x128xf32> to vector<64xf32>
    %192 = vector.shape_cast %191 : vector<64xf32> to vector<64x1xf32>
    %cst_37 = arith.constant 1.280000e+02 : f32
    %193 = vector.broadcast %cst_37 : f32 to vector<64x1xf32>
    %194 = arith.divf %192, %193 : vector<64x1xf32>
    %195 = vector.broadcast %187 : vector<64x1xf32> to vector<64x128xf32>
    %196 = arith.subf %181, %195 : vector<64x128xf32>
    %cst_38 = arith.constant 9.99999974E-6 : f32
    %197 = vector.broadcast %cst_38 : f32 to vector<64x1xf32>
    %198 = arith.addf %194, %197 : vector<64x1xf32>
    %199 = math.rsqrt %198 : vector<64x1xf32>
    %200 = vector.broadcast %199 : vector<64x1xf32> to vector<64x128xf32>
    %201 = arith.mulf %196, %200 : vector<64x128xf32>
    %202 = vector.broadcast %182 : vector<1x128xf32> to vector<64x128xf32>
    %203 = arith.mulf %201, %202 : vector<64x128xf32>
    %204 = vector.broadcast %183 : vector<1x128xf32> to vector<64x128xf32>
    %205 = arith.addf %203, %204 : vector<64x128xf32>
    %206 = arith.truncf %205 : vector<64x128xf32> to vector<64x128xbf16>
    %c0_39 = arith.constant 0 : index
    %c0_40 = arith.constant 0 : index
    %207 = vector.load %arg4[%c0_39, %c0_40] : memref<128x128xbf16, #tpu.memory_space<vmem>>, vector<128x128xbf16>
    %cst_41 = arith.constant dense<0.000000e+00> : vector<64x128xf32>
    %208 = tpu.matmul %206, %207, %cst_41 {dimension_numbers = #tpu.dot_dimension_numbers<[1], [0], [0], [1], [0, 0, 1, 1], [], []>} : vector<64x128xbf16>, vector<128x128xbf16>, vector<64x128xf32> -> vector<64x128xf32>
    %c3 = arith.constant 3 : index
    %c0_42 = arith.constant 0 : index
    %209 = vector.load %arg5[%c3, %c0_42] : memref<8x128xf32, #tpu.memory_space<vmem>>, vector<1x128xf32>
    %210 = vector.broadcast %209 : vector<1x128xf32> to vector<64x128xf32>
    %211 = arith.addf %208, %210 : vector<64x128xf32>
    %cst_43 = arith.constant 0.000000e+00 : f32
    %212 = vector.broadcast %cst_43 : f32 to vector<64x128xf32>
    %213 = arith.cmpf oge, %211, %212 : vector<64x128xf32>
    %cst_44 = arith.constant 0.00999999977 : f32
    %214 = vector.broadcast %cst_44 : f32 to vector<64x128xf32>
    %215 = arith.mulf %214, %211 : vector<64x128xf32>
    %216 = arith.select %213, %211, %215 : vector<64x128xi1>, vector<64x128xf32>
    %217 = arith.addf %205, %216 : vector<64x128xf32>
    %c6 = arith.constant 6 : index
    %c0_45 = arith.constant 0 : index
    %218 = vector.load %arg5[%c6, %c0_45] : memref<8x128xf32, #tpu.memory_space<vmem>>, vector<1x128xf32>
    %c7 = arith.constant 7 : index
    %c0_46 = arith.constant 0 : index
    %219 = vector.load %arg5[%c7, %c0_46] : memref<8x128xf32, #tpu.memory_space<vmem>>, vector<1x128xf32>
    %cst_47 = arith.constant dense<0.000000e+00> : vector<64xf32>
    %220 = vector.multi_reduction <add>, %217, %cst_47 [1] : vector<64x128xf32> to vector<64xf32>
    %221 = vector.shape_cast %220 : vector<64xf32> to vector<64x1xf32>
    %cst_48 = arith.constant 1.280000e+02 : f32
    %222 = vector.broadcast %cst_48 : f32 to vector<64x1xf32>
    %223 = arith.divf %221, %222 : vector<64x1xf32>
    %224 = vector.broadcast %223 : vector<64x1xf32> to vector<64x128xf32>
    %225 = arith.subf %217, %224 : vector<64x128xf32>
    %226 = arith.mulf %225, %225 : vector<64x128xf32>
    %cst_49 = arith.constant dense<0.000000e+00> : vector<64xf32>
    %227 = vector.multi_reduction <add>, %226, %cst_49 [1] : vector<64x128xf32> to vector<64xf32>
    %228 = vector.shape_cast %227 : vector<64xf32> to vector<64x1xf32>
    %cst_50 = arith.constant 1.280000e+02 : f32
    %229 = vector.broadcast %cst_50 : f32 to vector<64x1xf32>
    %230 = arith.divf %228, %229 : vector<64x1xf32>
    %231 = vector.broadcast %223 : vector<64x1xf32> to vector<64x128xf32>
    %232 = arith.subf %217, %231 : vector<64x128xf32>
    %cst_51 = arith.constant 9.99999974E-6 : f32
    %233 = vector.broadcast %cst_51 : f32 to vector<64x1xf32>
    %234 = arith.addf %230, %233 : vector<64x1xf32>
    %235 = math.rsqrt %234 : vector<64x1xf32>
    %236 = vector.broadcast %235 : vector<64x1xf32> to vector<64x128xf32>
    %237 = arith.mulf %232, %236 : vector<64x128xf32>
    %238 = vector.broadcast %218 : vector<1x128xf32> to vector<64x128xf32>
    %239 = arith.mulf %237, %238 : vector<64x128xf32>
    %240 = vector.broadcast %219 : vector<1x128xf32> to vector<64x128xf32>
    %241 = arith.addf %239, %240 : vector<64x128xf32>
    %242 = arith.truncf %241 : vector<64x128xf32> to vector<64x128xbf16>
    %c0_52 = arith.constant 0 : index
    %c0_53 = arith.constant 0 : index
    %243 = vector.load %arg8[%c0_52, %c0_53] : memref<64x128xbf16, #tpu.memory_space<vmem>>, vector<64x128xbf16>
    tpu.vector_store %arg8[%c0_52, %c0_53], %242 {strides = array<i32>} : memref<64x128xbf16, #tpu.memory_space<vmem>>, vector<64x128xbf16>,
    return
  }
  func.func @transform_0(%arg0: i32) -> (i32, i32) {
    %c0_i32 = arith.constant 0 : i32
    %c0_i32_0 = arith.constant 0 : i32
    return %arg0, %c0_i32 : i32, i32
  }
  func.func @transform_1(%arg0: i32) -> (i32, i32) {
    %c0_i32 = arith.constant 0 : i32
    %c0_i32_0 = arith.constant 0 : i32
    %c0_i32_1 = arith.constant 0 : i32
    return %c0_i32, %c0_i32_0 : i32, i32
  }
  func.func @transform_2(%arg0: i32) -> (i32, i32) {
    %c0_i32 = arith.constant 0 : i32
    %c0_i32_0 = arith.constant 0 : i32
    %c0_i32_1 = arith.constant 0 : i32
    return %c0_i32, %c0_i32_0 : i32, i32
  }
  func.func @transform_3(%arg0: i32) -> (i32, i32) {
    %c0_i32 = arith.constant 0 : i32
    %c0_i32_0 = arith.constant 0 : i32
    %c0_i32_1 = arith.constant 0 : i32
    return %c0_i32, %c0_i32_0 : i32, i32
  }
  func.func @transform_4(%arg0: i32) -> (i32, i32) {
    %c0_i32 = arith.constant 0 : i32
    %c0_i32_0 = arith.constant 0 : i32
    %c0_i32_1 = arith.constant 0 : i32
    return %c0_i32, %c0_i32_0 : i32, i32
  }
  func.func @transform_5(%arg0: i32) -> (i32, i32) {
    %c0_i32 = arith.constant 0 : i32
    %c0_i32_0 = arith.constant 0 : i32
    %c0_i32_1 = arith.constant 0 : i32
    return %c0_i32, %c0_i32_0 : i32, i32
  }
  func.func @transform_6(%arg0: i32) -> (i32, i32) {
    %c0_i32 = arith.constant 0 : i32
    %c0_i32_0 = arith.constant 0 : i32
    %c0_i32_1 = arith.constant 0 : i32
    return %c0_i32, %c0_i32_0 : i32, i32
  }
  func.func @transform_7(%arg0: i32) -> (i32, i32) {
    %c0_i32 = arith.constant 0 : i32
    %c0_i32_0 = arith.constant 0 : i32
    return %arg0, %c0_i32 : i32, i32
  }
}

</mosaic_0001>

<llo_original>
// kernel: tile.9
$region0: #{tile.9}
  %s0 = inlined_call_operand.vmem [shape: f32[8,7,384], index: 0, kind: input, shape index: {}]
  %s1 = inlined_call_operand.vmem [shape: f32[56,384], index: 1, kind: output, shape index: {}]
  %v2 = vld [vmem:[%s0] sm:$0x7f]
  %3 = vst [vmem:[%s1] sm:$0x7f] %v2
  %s4 = scalar_lea.vmem %s0, 8
  %v5 = vld [vmem:[%s4] sm:$0x7f]
  %s6 = scalar_lea.vmem %s1, 8
  %7 = vst [vmem:[%s6] sm:$0x7f] %v5
  %s8 = scalar_lea.vmem %s0, 16
  %v9 = vld [vmem:[%s8] sm:$0x7f]
  %s10 = scalar_lea.vmem %s1, 16
  %11 = vst [vmem:[%s10] sm:$0x7f] %v9
  %s12 = scalar_lea.vmem %s0, 24
  %v13 = vld [vmem:[%s12] sm:$0x7f]
  %s14 = scalar_lea.vmem %s1, 7
  %15 = vst [vmem:[%s14] ss:$17 sm:$0x3] %v13
  %s16 = scalar_lea.vmem %s1, 23
  %17 = vst [vmem:[%s16] sm:$0x7c] %v13
  %s18 = scalar_lea.vmem %s0, 32
  %v19 = vld [vmem:[%s18] sm:$0x7f]
  %s20 = scalar_lea.vmem %s1, 15
  %21 = vst [vmem:[%s20] ss:$17 sm:$0x3] %v19
  %s22 = scalar_lea.vmem %s1, 31
  %23 = vst [vmem:[%s22] sm:$0x7c] %v19
  %s24 = scalar_lea.vmem %s0, 40
  %v25 = vld [vmem:[%s24] sm:$0x7f]
  %s26 = scalar_lea.vmem %s1, 23
  %27 = vst [vmem:[%s26] ss:$17 sm:$0x3] %v25
  %s28 = scalar_lea.vmem %s1, 39
  %29 = vst [vmem:[%s28] sm:$0x7c] %v25
  %s30 = scalar_lea.vmem %s0, 48
  %v31 = vld [vmem:[%s30] sm:$0x7f]
  %s32 = scalar_lea.vmem %s1, 30
  %33 = vst [vmem:[%s32] sm:$0x3] %v31
  %s34 = scalar_lea.vmem %s1, 46
  %35 = vst [vmem:[%s34] sm:$0x7c] %v31
  %s36 = scalar_lea.vmem %s0, 56
  %v37 = vld [vmem:[%s36] sm:$0x7f]
  %s38 = scalar_lea.vmem %s1, 38
  %39 = vst [vmem:[%s38] sm:$0x3] %v37
  %s40 = scalar_lea.vmem %s1, 54
  %41 = vst [vmem:[%s40] sm:$0x7c] %v37
  %s42 = scalar_lea.vmem %s0, 64
  %v43 = vld [vmem:[%s42] sm:$0x7f]
  %s44 = scalar_lea.vmem %s1, 46
  %45 = vst [vmem:[%s44] sm:$0x3] %v43
  %s46 = scalar_lea.vmem %s1, 62
  %47 = vst [vmem:[%s46] sm:$0x7c] %v43
  %s48 = scalar_lea.vmem %s0, 72
  %v49 = vld [vmem:[%s48] sm:$0x7f]
  %s50 = scalar_lea.vmem %s1, 53
  %51 = vst [vmem:[%s50] sm:$0x7] %v49
  %s52 = scalar_lea.vmem %s1, 69
  %53 = vst [vmem:[%s52] sm:$0x78] %v49
  %s54 = scalar_lea.vmem %s0, 80
  %v55 = vld [vmem:[%s54] sm:$0x7f]
  %s56 = scalar_lea.vmem %s1, 61
  %57 = vst [vmem:[%s56] sm:$0x7] %v55
  %s58 = scalar_lea.vmem %s1, 77
  %59 = vst [vmem:[%s58] sm:$0x78] %v55
  %s60 = scalar_lea.vmem %s0, 88
  %v61 = vld [vmem:[%s60] sm:$0x7f]
  %s62 = scalar_lea.vmem %s1, 69
  %63 = vst [vmem:[%s62] sm:$0x7] %v61
  %s64 = scalar_lea.vmem %s1, 85
  %65 = vst [vmem:[%s64] sm:$0x78] %v61
  %s66 = scalar_lea.vmem %s0, 96
  %v67 = vld [vmem:[%s66] sm:$0x7f]
  %s68 = scalar_lea.vmem %s1, 76
  %69 = vst [vmem:[%s68] sm:$0xf] %v67
  %s70 = scalar_lea.vmem %s1, 92
  %71 = vst [vmem:[%s70] sm:$0x70] %v67
  %s72 = scalar_lea.vmem %s0, 104
  %v73 = vld [vmem:[%s72] sm:$0x7f]
  %s74 = scalar_lea.vmem %s1, 84
  %75 = vst [vmem:[%s74] sm:$0xf] %v73
  %s76 = scalar_lea.vmem %s1, 100
  %77 = vst [vmem:[%s76] sm:$0x70] %v73
  %s78 = scalar_lea.vmem %s0, 112
  %v79 = vld [vmem:[%s78] sm:$0x7f]
  %s80 = scalar_lea.vmem %s1, 92
  %81 = vst [vmem:[%s80] sm:$0xf] %v79
  %s82 = scalar_lea.vmem %s1, 108
  %83 = vst [vmem:[%s82] sm:$0x70] %v79
  %s84 = scalar_lea.vmem %s0, 120
  %v85 = vld [vmem:[%s84] sm:$0x7f]
  %s86 = scalar_lea.vmem %s1, 99
  %87 = vst [vmem:[%s86] sm:$0x1f] %v85
  %s88 = scalar_lea.vmem %s1, 115
  %89 = vst [vmem:[%s88] sm:$0x60] %v85
  %s90 = scalar_lea.vmem %s0, 128
  %v91 = vld [vmem:[%s90] sm:$0x7f]
  %s92 = scalar_lea.vmem %s1, 107
  %93 = vst [vmem:[%s92] sm:$0x1f] %v91
  %s94 = scalar_lea.vmem %s1, 123
  %95 = vst [vmem:[%s94] sm:$0x60] %v91
  %s96 = scalar_lea.vmem %s0, 136
  %v97 = vld [vmem:[%s96] sm:$0x7f]
  %s98 = scalar_lea.vmem %s1, 115
  %99 = vst [vmem:[%s98] sm:$0x1f] %v97
  %s100 = scalar_lea.vmem %s1, 131
  %101 = vst [vmem:[%s100] sm:$0x60] %v97
  %s102 = scalar_lea.vmem %s0, 144
  %v103 = vld [vmem:[%s102] sm:$0x7f]
  %s104 = scalar_lea.vmem %s1, 122
  %105 = vst [vmem:[%s104] sm:$0x3f] %v103
  %s106 = scalar_lea.vmem %s1, 138
  %107 = vst [vmem:[%s106] sm:$0x40] %v103
  %s108 = scalar_lea.vmem %s0, 152
  %v109 = vld [vmem:[%s108] sm:$0x7f]
  %s110 = scalar_lea.vmem %s1, 130
  %111 = vst [vmem:[%s110] sm:$0x3f] %v109
  %s112 = scalar_lea.vmem %s1, 146
  %113 = vst [vmem:[%s112] sm:$0x40] %v109
  %s114 = scalar_lea.vmem %s0, 160
  %v115 = vld [vmem:[%s114] sm:$0x7f]
  %s116 = scalar_lea.vmem %s1, 138
  %117 = vst [vmem:[%s116] sm:$0x3f] %v115
  %s118 = scalar_lea.vmem %s1, 154
  %119 = vst [vmem:[%s118] sm:$0x40] %v115
  %s120 = scalar_lea.vmem %s0, 168
  %v121 = vld [vmem:[%s120] sm:$0x7f]
  %s122 = scalar_lea.vmem %s1, 145
  %123 = vst [vmem:[%s122] sm:$0x7f] %v121
  %s124 = scalar_lea.vmem %s0, 176
  %v125 = vld [vmem:[%s124] sm:$0x7f]
  %s126 = scalar_lea.vmem %s1, 153
  %127 = vst [vmem:[%s126] sm:$0x7f] %v125
  %s128 = scalar_lea.vmem %s0, 184
  %v129 = vld [vmem:[%s128] sm:$0x7f]
  %s130 = scalar_lea.vmem %s1, 161
  %131 = vst [vmem:[%s130] sm:$0x7f] %v129

// kernel: attention_mapper_forward.1
$region0: #{attention_mapper_forward.1}
  #allocation0 [shape = 'u32[]', space=smem, size = 0x4, offset = 0x4, fixed_abs, tag = 'smem constant byte address 0x4 - core index']
  #allocation1 [shape = 'u32[144,128]{1,0:T(1,128)}', space=vmem, size = 0x12000, scoped, tag = 'internal scratch']
  %s0 = inlined_call_operand.vmem [shape: bf16[8,128], index: 0, kind: input, shape index: {}]
  %s1 = inlined_call_operand.vmem [shape: f32[56,384], index: 1, kind: input, shape index: {}]
  %s2 = inlined_call_operand.vmem [shape: bf16[128,384], index: 2, kind: input, shape index: {}]
  %s3 = inlined_call_operand.vmem [shape: bf16[128,128], index: 3, kind: input, shape index: {}]
  %s4 = inlined_call_operand.vmem [shape: f32[8,128], index: 4, kind: input, shape index: {}]
  %s5 = inlined_call_operand.vmem [shape: f32[64,64], index: 5, kind: input, shape index: {}]
  %s6 = inlined_call_operand.vmem [shape: bf16[8,128], index: 6, kind: input, shape index: {}]
  %s7 = inlined_call_operand.vmem [shape: bf16[64,128], index: 7, kind: output, shape index: {}]
  %s8 = sld [smem:[#allocation0]]
  $region38: #{attention_mapper_forward.1} parent=0
    _
  %s10 = ssub.s32 1, %s8
  %s11 = scalar_select 0, %s10, %s8
  // Predicated region
  $region2: #{attention_mapper_forward.1} parent=0 // pred_check
    _
  $region3: #{attention_mapper_forward.1} parent=0 // pred_check_branch
    %13 = sbr.rel (0) target = $region5
  $region4: #{attention_mapper_forward.1} parent=0 // pred_region
    _
  $region5: #{attention_mapper_forward.1} parent=0 // pred_fallthru
    _
  // Predicated region
  $region6: #{attention_mapper_forward.1} parent=0 // pred_check
    _
  $region7: #{attention_mapper_forward.1} parent=0 // pred_check_branch
    %15 = sbr.rel (0) target = $region9
  $region8: #{attention_mapper_forward.1} parent=0 // pred_region
    _
  $region9: #{attention_mapper_forward.1} parent=0 // pred_fallthru
    _
  // Predicated region
  $region10: #{attention_mapper_forward.1} parent=0 // pred_check
    _
  $region11: #{attention_mapper_forward.1} parent=0 // pred_check_branch
    %17 = sbr.rel (0) target = $region13
  $region12: #{attention_mapper_forward.1} parent=0 // pred_region
    _
  $region13: #{attention_mapper_forward.1} parent=0 // pred_fallthru
    _
  // Predicated region
  $region14: #{attention_mapper_forward.1} parent=0 // pred_check
    _
  $region15: #{attention_mapper_forward.1} parent=0 // pred_check_branch
    %19 = sbr.rel (0) target = $region17
  $region16: #{attention_mapper_forward.1} parent=0 // pred_region
    _
  $region17: #{attention_mapper_forward.1} parent=0 // pred_fallthru
    _
  // Predicated region
  $region18: #{attention_mapper_forward.1} parent=0 // pred_check
    _
  $region19: #{attention_mapper_forward.1} parent=0 // pred_check_branch
    %21 = sbr.rel (0) target = $region21
  $region20: #{attention_mapper_forward.1} parent=0 // pred_region
    _
  $region21: #{attention_mapper_forward.1} parent=0 // pred_fallthru
    _
  // Predicated region
  $region22: #{attention_mapper_forward.1} parent=0 // pred_check
    _
  $region23: #{attention_mapper_forward.1} parent=0 // pred_check_branch
    %23 = sbr.rel (0) target = $region25
  $region24: #{attention_mapper_forward.1} parent=0 // pred_region
    _
  $region25: #{attention_mapper_forward.1} parent=0 // pred_fallthru
    _
  // Predicated region
  $region26: #{attention_mapper_forward.1} parent=0 // pred_check
    _
  $region27: #{attention_mapper_forward.1} parent=0 // pred_check_branch
    %25 = sbr.rel (0) target = $region29
  $region28: #{attention_mapper_forward.1} parent=0 // pred_region
    _
  $region29: #{attention_mapper_forward.1} parent=0 // pred_fallthru
    _
  %v27 = vld [vmem:[%s0] sm:$0xf]
  %v28 = vld [vmem:[%s2] sm:$0xff]
  %v29 = vld [vmem:[%s2 + $0x8] sm:$0xf]
  %v30 = vld [vmem:[%s2 + $0xc] sm:$0xff]
  %v31 = vld [vmem:[%s2 + $0x14] sm:$0xf]
  %v32 = vld [vmem:[%s2 + $0x18] sm:$0xff]
  %v33 = vld [vmem:[%s2 + $0x20] sm:$0xf]
  %v34 = vld [vmem:[%s2 + $0x24] sm:$0xff]
  %v35 = vld [vmem:[%s2 + $0x2c] sm:$0xf]
  %v36 = vld [vmem:[%s2 + $0x30] sm:$0xff]
  %v37 = vld [vmem:[%s2 + $0x38] sm:$0xf]
  %v38 = vld [vmem:[%s2 + $0x3c] sm:$0xff]
  %v39 = vld [vmem:[%s2 + $0x44] sm:$0xf]
  %v40 = vld [vmem:[%s2 + $0x48] sm:$0xff]
  %v41 = vld [vmem:[%s2 + $0x50] sm:$0xf]
  %v42 = vld [vmem:[%s2 + $0x54] sm:$0xff]
  %v43 = vld [vmem:[%s2 + $0x5c] sm:$0xf]
  %v44 = vld [vmem:[%s2 + $0x60] sm:$0xff]
  %v45 = vld [vmem:[%s2 + $0x68] sm:$0xf]
  %v46 = vld [vmem:[%s2 + $0x6c] sm:$0xff]
  %v47 = vld [vmem:[%s2 + $0x74] sm:$0xf]
  %v48 = vld [vmem:[%s2 + $0x78] sm:$0xff]
  %v49 = vld [vmem:[%s2 + $0x80] sm:$0xf]
  %v50 = vld [vmem:[%s2 + $0x84] sm:$0xff]
  %v51 = vld [vmem:[%s2 + $0x8c] sm:$0xf]
  %v52 = vld [vmem:[%s2 + $0x90] sm:$0xff]
  %v53 = vld [vmem:[%s2 + $0x98] sm:$0xf]
  %v54 = vld [vmem:[%s2 + $0x9c] sm:$0xff]
  %v55 = vld [vmem:[%s2 + $0xa4] sm:$0xf]
  %v56 = vld [vmem:[%s2 + $0xa8] sm:$0xff]
  %v57 = vld [vmem:[%s2 + $0xb0] sm:$0xf]
  %v58 = vld [vmem:[%s2 + $0xb4] sm:$0xff]
  %v59 = vld [vmem:[%s2 + $0xbc] sm:$0xf]
  %v92 = vunpack.c.l.b16 %v28
  %v93 = vunpack.c.h.b16 %v28
  %v94 = vunpack.c.l.b16 %v29
  %v95 = vunpack.c.l.b16 %v30
  %v96 = vunpack.c.h.b16 %v30
  %v97 = vunpack.c.l.b16 %v31
  %v98 = vunpack.c.l.b16 %v32
  %v99 = vunpack.c.h.b16 %v32
  %v100 = vunpack.c.l.b16 %v33
  %v101 = vunpack.c.l.b16 %v34
  %v102 = vunpack.c.h.b16 %v34
  %v103 = vunpack.c.l.b16 %v35
  %v104 = vunpack.c.l.b16 %v36
  %v105 = vunpack.c.h.b16 %v36
  %v106 = vunpack.c.l.b16 %v37
  %v107 = vunpack.c.l.b16 %v38
  %v108 = vunpack.c.h.b16 %v38
  %v109 = vunpack.c.l.b16 %v39
  %v110 = vunpack.c.l.b16 %v40
  %v111 = vunpack.c.h.b16 %v40
  %v112 = vunpack.c.l.b16 %v41
  %v113 = vunpack.c.l.b16 %v42
  %v114 = vunpack.c.h.b16 %v42
  %v115 = vunpack.c.l.b16 %v43
  %v116 = vunpack.c.l.b16 %v44
  %v117 = vunpack.c.h.b16 %v44
  %v118 = vunpack.c.l.b16 %v45
  %v119 = vunpack.c.l.b16 %v46
  %v120 = vunpack.c.h.b16 %v46
  %v121 = vunpack.c.l.b16 %v47
  %v122 = vunpack.c.l.b16 %v48
  %v123 = vunpack.c.h.b16 %v48
  %v124 = vunpack.c.l.b16 %v49
  %v125 = vunpack.c.l.b16 %v50
  %v126 = vunpack.c.h.b16 %v50
  %v127 = vunpack.c.l.b16 %v51
  %v128 = vunpack.c.l.b16 %v52
  %v129 = vunpack.c.h.b16 %v52
  %v130 = vunpack.c.l.b16 %v53
  %v131 = vunpack.c.l.b16 %v54
  %v132 = vunpack.c.h.b16 %v54
  %v133 = vunpack.c.l.b16 %v55
  %v134 = vunpack.c.l.b16 %v56
  %v135 = vunpack.c.h.b16 %v56
  %v136 = vunpack.c.l.b16 %v57
  %v137 = vunpack.c.l.b16 %v58
  %v138 = vunpack.c.h.b16 %v58
  %v139 = vunpack.c.l.b16 %v59
  %v140 = vpack.c.b16 %v95, %v92
  %v141 = vpack.c.b16 %v96, %v93
  %v142 = vpack.c.b16 %v97, %v94
  %v143 = vpack.c.b16 %v101, %v98
  %v144 = vpack.c.b16 %v102, %v99
  %v145 = vpack.c.b16 %v103, %v100
  %v146 = vpack.c.b16 %v107, %v104
  %v147 = vpack.c.b16 %v108, %v105
  %v148 = vpack.c.b16 %v109, %v106
  %v149 = vpack.c.b16 %v113, %v110
  %v150 = vpack.c.b16 %v114, %v111
  %v151 = vpack.c.b16 %v115, %v112
  %v152 = vpack.c.b16 %v119, %v116
  %v153 = vpack.c.b16 %v120, %v117
  %v154 = vpack.c.b16 %v121, %v118
  %v155 = vpack.c.b16 %v125, %v122
  %v156 = vpack.c.b16 %v126, %v123
  %v157 = vpack.c.b16 %v127, %v124
  %v158 = vpack.c.b16 %v131, %v128
  %v159 = vpack.c.b16 %v132, %v129
  %v160 = vpack.c.b16 %v133, %v130
  %v161 = vpack.c.b16 %v137, %v134
  %v162 = vpack.c.b16 %v138, %v135
  %v163 = vpack.c.b16 %v139, %v136
  %188 = vmatprep.subr.bf16.mxu0 %v141
  %189 = vmatpush1.bf16.msra.mxu0 %v140
  %190 = vmatprep.subr.bf16.mxu0 %v144
  %191 = vmatpush1.bf16.msra.mxu0 %v143
  %192 = vmatprep.subr.bf16.mxu0 %v147
  %193 = vmatpush1.bf16.msra.mxu0 %v146
  %194 = vmatprep.subr.bf16.mxu0 %v150
  %195 = vmatpush1.bf16.msra.mxu0 %v149
  %196 = vmatprep.subr.bf16.mxu0 %v153
  %197 = vmatpush1.bf16.msra.mxu0 %v152
  %198 = vmatprep.subr.bf16.mxu0 %v156
  %199 = vmatpush1.bf16.msra.mxu0 %v155
  %200 = vmatprep.subr.bf16.mxu0 %v159
  %201 = vmatpush1.bf16.msra.mxu0 %v158
  %202 = vmatprep.subr.bf16.mxu0 %v162
  %203 = vmatpush1.bf16.msra.mxu0 %v161
  %204 = vmatprep.subr.bf16.mxu0 0
  %205 = vmatpush1.bf16.msra.mxu0 0
  %206 = vmatprep.subr.bf16.mxu0 0
  %207 = vmatpush1.bf16.msra.mxu0 0
  %208 = vmatprep.subr.bf16.mxu0 0
  %209 = vmatpush1.bf16.msra.mxu0 0
  %210 = vmatprep.subr.bf16.mxu0 0
  %211 = vmatpush1.bf16.msra.mxu0 0
  %212 = vmatprep.subr.bf16.mxu0 0
  %213 = vmatpush1.bf16.msra.mxu0 0
  %214 = vmatprep.subr.bf16.mxu0 0
  %215 = vmatpush1.bf16.msra.mxu0 0
  %216 = vmatprep.subr.bf16.mxu0 0
  %217 = vmatpush1.bf16.msra.mxu0 0
  %218 = vmatprep.subr.bf16.mxu0 0
  %219 = vmatpush1.bf16.msra.mxu0 0
  %220 = vmatprep.mubr.bf16.mxu0 0
  %221 = vmatmul.mubr.bf16.gmra.mrb[0].mxu0 %v27
  %v222 = vpop.f32.mrb[0].mxu0
  %v223 = vadd.f32 0.0, %v222
  %v224 = vpop.f32.mrb[0].mxu0
  %v225 = vadd.f32 0.0, %v224
  %v226 = vpop.f32.mrb[0].mxu0
  %v227 = vpop.f32.mrb[0].mxu0
  %228 = vdwg.mxu0
  %229 = vmatprep.subr.bf16.mxu0 0
  %230 = vmatpush1.bf16.msra.mxu0 %v142
  %231 = vmatprep.subr.bf16.mxu0 0
  %232 = vmatpush1.bf16.msra.mxu0 %v145
  %233 = vmatprep.subr.bf16.mxu0 0
  %234 = vmatpush1.bf16.msra.mxu0 %v148
  %235 = vmatprep.subr.bf16.mxu0 0
  %236 = vmatpush1.bf16.msra.mxu0 %v151
  %237 = vmatprep.subr.bf16.mxu0 0
  %238 = vmatpush1.bf16.msra.mxu0 %v154
  %239 = vmatprep.subr.bf16.mxu0 0
  %240 = vmatpush1.bf16.msra.mxu0 %v157
  %241 = vmatprep.subr.bf16.mxu0 0
  %242 = vmatpush1.bf16.msra.mxu0 %v160
  %243 = vmatprep.subr.bf16.mxu0 0
  %244 = vmatpush1.bf16.msra.mxu0 %v163
  %245 = vmatprep.subr.bf16.mxu0 0
  %246 = vmatpush1.bf16.msra.mxu0 0
  %247 = vmatprep.subr.bf16.mxu0 0
  %248 = vmatpush1.bf16.msra.mxu0 0
  %249 = vmatprep.subr.bf16.mxu0 0
  %250 = vmatpush1.bf16.msra.mxu0 0
  %251 = vmatprep.subr.bf16.mxu0 0
  %252 = vmatpush1.bf16.msra.mxu0 0
  %253 = vmatprep.subr.bf16.mxu0 0
  %254 = vmatpush1.bf16.msra.mxu0 0
  %255 = vmatprep.subr.bf16.mxu0 0
  %256 = vmatpush1.bf16.msra.mxu0 0
  %257 = vmatprep.subr.bf16.mxu0 0
  %258 = vmatpush1.bf16.msra.mxu0 0
  %259 = vmatprep.subr.bf16.mxu0 0
  %260 = vmatpush1.bf16.msra.mxu0 0
  %261 = vmatprep.mubr.bf16.mxu0 0
  %262 = vmatmul.mubr.bf16.gmra.mrb[0].mxu0 %v27
  %v263 = vpop.f32.mrb[0].mxu0
  %v264 = vadd.f32 0.0, %v263
  %v265 = vpop.f32.mrb[0].mxu0
  %v266 = vpop.f32.mrb[0].mxu0
  %v267 = vpop.f32.mrb[0].mxu0
  %268 = vdwg.mxu0
  %v269 = vld [vmem:[%s1] sm:$0xff]
  %v270 = vld [vmem:[%s1 + $0x8] sm:$0xff]
  %v271 = vld [vmem:[%s1 + $0x10] sm:$0xff]
  %v272 = vld [vmem:[%s1 + $0x18] sm:$0xff]
  %v273 = vld [vmem:[%s1 + $0x20] sm:$0xff]
  %v274 = vld [vmem:[%s1 + $0x28] sm:$0xff]
  %v275 = vld [vmem:[%s1 + $0x30] sm:$0xff]
  %v276 = vld [vmem:[%s1 + $0x38] sm:$0xff]
  %v277 = vld [vmem:[%s1 + $0x40] sm:$0xff]
  %v278 = vld [vmem:[%s1 + $0x48] sm:$0xff]
  %v279 = vld [vmem:[%s1 + $0x50] sm:$0xff]
  %v280 = vld [vmem:[%s1 + $0x58] sm:$0xff]
  %v281 = vld [vmem:[%s1 + $0x60] sm:$0xff]
  %v282 = vld [vmem:[%s1 + $0x68] sm:$0xff]
  %v283 = vld [vmem:[%s1 + $0x70] sm:$0xff]
  %v284 = vld [vmem:[%s1 + $0x78] sm:$0xff]
  %v285 = vld [vmem:[%s1 + $0x80] sm:$0xff]
  %v286 = vld [vmem:[%s1 + $0x88] sm:$0xff]
  %v287 = vld [vmem:[%s1 + $0x90] sm:$0xff]
  %v288 = vld [vmem:[%s1 + $0x98] sm:$0xff]
  %v289 = vld [vmem:[%s1 + $0xa0] sm:$0xff]
  %v290 = vld [vmem:[%s4] sm:$0x1]
  %v291 = vlaneseq
  %v292 = vshrl.u32 %v291, 7
  %v293 = vsub.s32 0, %v292
  %v294 = vrot.slane %v290, %v293
  %v295 = vadd.f32 %v269, %v294
  %v296 = vadd.f32 %v272, %v294
  %v297 = vadd.f32 %v275, %v294
  %v298 = vadd.f32 %v278, %v294
  %v299 = vadd.f32 %v281, %v294
  %v300 = vadd.f32 %v284, %v294
  %v301 = vadd.f32 %v287, %v294
  %v302 = vadd.f32 %v223, %v294
  %v303 = vld [vmem:[%s4 + $0x1] sm:$0x1]
  %v304 = vlaneseq
  %v305 = vshrl.u32 %v304, 7
  %v306 = vsub.s32 0, %v305
  %v307 = vrot.slane %v303, %v306
  %v308 = vadd.f32 %v270, %v307
  %v309 = vadd.f32 %v273, %v307
  %v310 = vadd.f32 %v276, %v307
  %v311 = vadd.f32 %v279, %v307
  %v312 = vadd.f32 %v282, %v307
  %v313 = vadd.f32 %v285, %v307
  %v314 = vadd.f32 %v288, %v307
  %v315 = vadd.f32 %v225, %v307
  %v316 = vld [vmem:[%s4 + $0x2] sm:$0x1]
  %v317 = vlaneseq
  %v318 = vshrl.u32 %v317, 7
  %v319 = vsub.s32 0, %v318
  %v320 = vrot.slane %v316, %v319
  %v321 = vadd.f32 %v271, %v320
  %v322 = vadd.f32 %v274, %v320
  %v323 = vadd.f32 %v277, %v320
  %v324 = vadd.f32 %v280, %v320
  %v325 = vadd.f32 %v283, %v320
  %v326 = vadd.f32 %v286, %v320
  %v327 = vadd.f32 %v289, %v320
  %v328 = vadd.f32 %v264, %v320
  %v329 = vmul.f32 %v295, 0.088388346
  %v330 = vmul.f32 %v296, 0.088388346
  %v331 = vmul.f32 %v297, 0.088388346
  %v332 = vmul.f32 %v298, 0.088388346
  %v333 = vmul.f32 %v299, 0.088388346
  %v334 = vmul.f32 %v300, 0.088388346
  %v335 = vmul.f32 %v301, 0.088388346
  %v336 = vmul.f32 %v302, 0.088388346
  %v337 = vpack.c.bf16 %v330, %v329
  %v338 = vpack.c.bf16 %v332, %v331
  %v339 = vpack.c.bf16 %v334, %v333
  %v340 = vpack.c.bf16 %v336, %v335
  %v341 = vpack.c.bf16 %v309, %v308
  %v342 = vpack.c.bf16 %v311, %v310
  %v343 = vpack.c.bf16 %v313, %v312
  %v344 = vpack.c.bf16 %v315, %v314
  %v345 = vpack.c.bf16 %v322, %v321
  %v346 = vpack.c.bf16 %v324, %v323
  %v347 = vpack.c.bf16 %v326, %v325
  %v348 = vpack.c.bf16 %v328, %v327
  %v349 = vld [vmem:[%s6] sm:$0xf]
  %v351 = vpack.i.b16 %v349, %v349
  %v353 = vlaneseq
  %v354 = vshrl.u32 %v353, 7
  %v355 = vsub.s32 0, %v354
  %v356 = vrot.slane %v351, %v355
  %v357 = vmul.bf16 %v341, %v356
  %v358 = vmul.bf16 %v342, %v356
  %v359 = vmul.bf16 %v343, %v356
  %v360 = vmul.bf16 %v344, %v356
  %v361 = vshrl.u32 %v349, 16
  %v362 = vpack.i.b16 %v361, %v361
  %v364 = vlaneseq
  %v365 = vshrl.u32 %v364, 7
  %v366 = vsub.s32 0, %v365
  %v367 = vrot.slane %v362, %v366
  %v368 = vmul.bf16 %v341, %v367
  %v369 = vmul.bf16 %v342, %v367
  %v370 = vmul.bf16 %v343, %v367
  %v371 = vmul.bf16 %v344, %v367
  %v372 = vlaneseq
  %v373 = vshrl.u32 %v372, 7
  %v374 = vsub.s32 1, %v373
  %v375 = vrot.slane %v351, %v374
  %v376 = vmul.bf16 %v341, %v375
  %v377 = vmul.bf16 %v342, %v375
  %v378 = vmul.bf16 %v343, %v375
  %v379 = vmul.bf16 %v344, %v375
  %v380 = vlaneseq
  %v381 = vshrl.u32 %v380, 7
  %v382 = vsub.s32 1, %v381
  %v383 = vrot.slane %v362, %v382
  %v384 = vmul.bf16 %v341, %v383
  %v385 = vmul.bf16 %v342, %v383
  %v386 = vmul.bf16 %v343, %v383
  %v387 = vmul.bf16 %v344, %v383
  %v388 = vlaneseq
  %v389 = vshrl.u32 %v388, 7
  %v390 = vsub.s32 2, %v389
  %v391 = vrot.slane %v351, %v390
  %v392 = vmul.bf16 %v341, %v391
  %v393 = vmul.bf16 %v342, %v391
  %v394 = vmul.bf16 %v343, %v391
  %v395 = vmul.bf16 %v344, %v391
  %v396 = vlaneseq
  %v397 = vshrl.u32 %v396, 7
  %v398 = vsub.s32 2, %v397
  %v399 = vrot.slane %v362, %v398
  %v400 = vmul.bf16 %v341, %v399
  %v401 = vmul.bf16 %v342, %v399
  %v402 = vmul.bf16 %v343, %v399
  %v403 = vmul.bf16 %v344, %v399
  %v404 = vlaneseq
  %v405 = vshrl.u32 %v404, 7
  %v406 = vsub.s32 3, %v405
  %v407 = vrot.slane %v351, %v406
  %v408 = vmul.bf16 %v341, %v407
  %v409 = vmul.bf16 %v342, %v407
  %v410 = vmul.bf16 %v343, %v407
  %v411 = vmul.bf16 %v344, %v407
  %v412 = vlaneseq
  %v413 = vshrl.u32 %v412, 7
  %v414 = vsub.s32 3, %v413
  %v415 = vrot.slane %v362, %v414
  %v416 = vmul.bf16 %v341, %v415
  %v417 = vmul.bf16 %v342, %v415
  %v418 = vmul.bf16 %v343, %v415
  %v419 = vmul.bf16 %v344, %v415
  %v420 = vmul.bf16 %v345, %v356
  %v421 = vmul.bf16 %v346, %v356
  %v422 = vmul.bf16 %v347, %v356
  %v423 = vmul.bf16 %v348, %v356
  %v424 = vmul.bf16 %v345, %v367
  %v425 = vmul.bf16 %v346, %v367
  %v426 = vmul.bf16 %v347, %v367
  %v427 = vmul.bf16 %v348, %v367
  %v428 = vmul.bf16 %v345, %v375
  %v429 = vmul.bf16 %v346, %v375
  %v430 = vmul.bf16 %v347, %v375
  %v431 = vmul.bf16 %v348, %v375
  %v432 = vmul.bf16 %v345, %v383
  %v433 = vmul.bf16 %v346, %v383
  %v434 = vmul.bf16 %v347, %v383
  %v435 = vmul.bf16 %v348, %v383
  %v436 = vmul.bf16 %v345, %v391
  %v437 = vmul.bf16 %v346, %v391
  %v438 = vmul.bf16 %v347, %v391
  %v439 = vmul.bf16 %v348, %v391
  %v440 = vmul.bf16 %v345, %v399
  %v441 = vmul.bf16 %v346, %v399
  %v442 = vmul.bf16 %v347, %v399
  %v443 = vmul.bf16 %v348, %v399
  %v444 = vmul.bf16 %v345, %v407
  %v445 = vmul.bf16 %v346, %v407
  %v446 = vmul.bf16 %v347, %v407
  %v447 = vmul.bf16 %v348, %v407
  %v448 = vmul.bf16 %v345, %v415
  %v449 = vmul.bf16 %v346, %v415
  %v450 = vmul.bf16 %v347, %v415
  %v451 = vmul.bf16 %v348, %v415
  %452 = vmatprep.subr.bf16.mxu0 0
  %453 = vmatpush1.bf16.xpose.msra.mxu0 %v357
  %454 = vmatprep.subr.bf16.mxu0 0
  %455 = vmatpush1.bf16.xpose.msra.mxu0 %v358
  %456 = vmatprep.subr.bf16.mxu0 0
  %457 = vmatpush1.bf16.xpose.msra.mxu0 %v359
  %458 = vmatprep.subr.bf16.mxu0 0
  %459 = vmatpush1.bf16.xpose.msra.mxu0 %v360
  %460 = vmatprep.subr.bf16.mxu0 0
  %461 = vmatpush1.bf16.xpose.msra.mxu0 %v368
  %462 = vmatprep.subr.bf16.mxu0 0
  %463 = vmatpush1.bf16.xpose.msra.mxu0 %v369
  %464 = vmatprep.subr.bf16.mxu0 0
  %465 = vmatpush1.bf16.xpose.msra.mxu0 %v370
  %466 = vmatprep.subr.bf16.mxu0 0
  %467 = vmatpush1.bf16.xpose.msra.mxu0 %v371
  %468 = vmatprep.subr.bf16.mxu0 0
  %469 = vmatpush1.bf16.xpose.msra.mxu0 %v376
  %470 = vmatprep.subr.bf16.mxu0 0
  %471 = vmatpush1.bf16.xpose.msra.mxu0 %v377
  %472 = vmatprep.subr.bf16.mxu0 0
  %473 = vmatpush1.bf16.xpose.msra.mxu0 %v378
  %474 = vmatprep.subr.bf16.mxu0 0
  %475 = vmatpush1.bf16.xpose.msra.mxu0 %v379
  %476 = vmatprep.subr.bf16.mxu0 0
  %477 = vmatpush1.bf16.xpose.msra.mxu0 %v384
  %478 = vmatprep.subr.bf16.mxu0 0
  %479 = vmatpush1.bf16.xpose.msra.mxu0 %v385
  %480 = vmatprep.subr.bf16.mxu0 0
  %481 = vmatpush1.bf16.xpose.msra.mxu0 %v386
  %482 = vmatprep.subr.bf16.mxu0 0
  %483 = vmatpush1.bf16.xpose.msra.mxu0 %v387
  %484 = vmatprep.mubr.bf16.mxu0 0
  %485 = vmatmul.mubr.bf16.gmra.mrb[0].mxu0 %v337
  %v486 = vpop.f32.mrb[0].mxu0
  %v487 = vadd.f32 0.0, %v486
  %v488 = vpop.f32.mrb[0].mxu0
  %v489 = vadd.f32 0.0, %v488
  %v490 = vpop.f32.mrb[0].mxu0
  %v491 = vadd.f32 0.0, %v490
  %v492 = vpop.f32.mrb[0].mxu0
  %v493 = vadd.f32 0.0, %v492
  %494 = vmatprep.mubr.bf16.mxu0 0
  %495 = vmatmul.mubr.bf16.gmra.mrb[0].mxu0 %v338
  %v496 = vpop.f32.mrb[0].mxu0
  %v497 = vadd.f32 0.0, %v496
  %v498 = vpop.f32.mrb[0].mxu0
  %v499 = vadd.f32 0.0, %v498
  %v500 = vpop.f32.mrb[0].mxu0
  %v501 = vadd.f32 0.0, %v500
  %v502 = vpop.f32.mrb[0].mxu0
  %v503 = vadd.f32 0.0, %v502
  %504 = vmatprep.mubr.bf16.mxu0 0
  %505 = vmatmul.mubr.bf16.gmra.mrb[0].mxu0 %v339
  %v506 = vpop.f32.mrb[0].mxu0
  %v507 = vadd.f32 0.0, %v506
  %v508 = vpop.f32.mrb[0].mxu0
  %v509 = vadd.f32 0.0, %v508
  %v510 = vpop.f32.mrb[0].mxu0
  %v511 = vadd.f32 0.0, %v510
  %v512 = vpop.f32.mrb[0].mxu0
  %v513 = vadd.f32 0.0, %v512
  %514 = vmatprep.mubr.bf16.mxu0 0
  %515 = vmatmul.mubr.bf16.gmra.mrb[0].mxu0 %v340
  %v516 = vpop.f32.mrb[0].mxu0
  %v517 = vadd.f32 0.0, %v516
  %v518 = vpop.f32.mrb[0].mxu0
  %v519 = vadd.f32 0.0, %v518
  %v520 = vpop.f32.mrb[0].mxu0
  %v521 = vadd.f32 0.0, %v520
  %v522 = vpop.f32.mrb[0].mxu0
  %v523 = vadd.f32 0.0, %v522
  %524 = vdwg.mxu0
  %525 = vmatprep.subr.bf16.mxu0 0
  %526 = vmatpush1.bf16.xpose.msra.mxu0 %v392
  %527 = vmatprep.subr.bf16.mxu0 0
  %528 = vmatpush1.bf16.xpose.msra.mxu0 %v393
  %529 = vmatprep.subr.bf16.mxu0 0
  %530 = vmatpush1.bf16.xpose.msra.mxu0 %v394
  %531 = vmatprep.subr.bf16.mxu0 0
  %532 = vmatpush1.bf16.xpose.msra.mxu0 %v395
  %533 = vmatprep.subr.bf16.mxu0 0
  %534 = vmatpush1.bf16.xpose.msra.mxu0 %v400
  %535 = vmatprep.subr.bf16.mxu0 0
  %536 = vmatpush1.bf16.xpose.msra.mxu0 %v401
  %537 = vmatprep.subr.bf16.mxu0 0
  %538 = vmatpush1.bf16.xpose.msra.mxu0 %v402
  %539 = vmatprep.subr.bf16.mxu0 0
  %540 = vmatpush1.bf16.xpose.msra.mxu0 %v403
  %541 = vmatprep.subr.bf16.mxu0 0
  %542 = vmatpush1.bf16.xpose.msra.mxu0 %v408
  %543 = vmatprep.subr.bf16.mxu0 0
  %544 = vmatpush1.bf16.xpose.msra.mxu0 %v409
  %545 = vmatprep.subr.bf16.mxu0 0
  %546 = vmatpush1.bf16.xpose.msra.mxu0 %v410
  %547 = vmatprep.subr.bf16.mxu0 0
  %548 = vmatpush1.bf16.xpose.msra.mxu0 %v411
  %549 = vmatprep.subr.bf16.mxu0 0
  %550 = vmatpush1.bf16.xpose.msra.mxu0 %v416
  %551 = vmatprep.subr.bf16.mxu0 0
  %552 = vmatpush1.bf16.xpose.msra.mxu0 %v417
  %553 = vmatprep.subr.bf16.mxu0 0
  %554 = vmatpush1.bf16.xpose.msra.mxu0 %v418
  %555 = vmatprep.subr.bf16.mxu0 0
  %556 = vmatpush1.bf16.xpose.msra.mxu0 %v419
  %557 = vmatprep.mubr.bf16.mxu0 0
  %558 = vmatmul.mubr.bf16.gmra.mrb[0].mxu0 %v337
  %v559 = vpop.f32.mrb[0].mxu0
  %v560 = vadd.f32 0.0, %v559
  %v561 = vpop.f32.mrb[0].mxu0
  %v562 = vadd.f32 0.0, %v561
  %v563 = vpop.f32.mrb[0].mxu0
  %v564 = vadd.f32 0.0, %v563
  %v565 = vpop.f32.mrb[0].mxu0
  %v566 = vadd.f32 0.0, %v565
  %567 = vmatprep.mubr.bf16.mxu0 0
  %568 = vmatmul.mubr.bf16.gmra.mrb[0].mxu0 %v338
  %v569 = vpop.f32.mrb[0].mxu0
  %v570 = vadd.f32 0.0, %v569
  %v571 = vpop.f32.mrb[0].mxu0
  %v572 = vadd.f32 0.0, %v571
  %v573 = vpop.f32.mrb[0].mxu0
  %v574 = vadd.f32 0.0, %v573
  %v575 = vpop.f32.mrb[0].mxu0
  %v576 = vadd.f32 0.0, %v575
  %577 = vmatprep.mubr.bf16.mxu0 0
  %578 = vmatmul.mubr.bf16.gmra.mrb[0].mxu0 %v339
  %v579 = vpop.f32.mrb[0].mxu0
  %v580 = vadd.f32 0.0, %v579
  %v581 = vpop.f32.mrb[0].mxu0
  %v582 = vadd.f32 0.0, %v581
  %v583 = vpop.f32.mrb[0].mxu0
  %v584 = vadd.f32 0.0, %v583
  %v585 = vpop.f32.mrb[0].mxu0
  %v586 = vadd.f32 0.0, %v585
  %587 = vmatprep.mubr.bf16.mxu0 0
  %588 = vmatmul.mubr.bf16.gmra.mrb[0].mxu0 %v340
  %v589 = vpop.f32.mrb[0].mxu0
  %v590 = vadd.f32 0.0, %v589
  %v591 = vpop.f32.mrb[0].mxu0
  %v592 = vadd.f32 0.0, %v591
  %v593 = vpop.f32.mrb[0].mxu0
  %v594 = vadd.f32 0.0, %v593
  %v595 = vpop.f32.mrb[0].mxu0
  %v596 = vadd.f32 0.0, %v595
  %597 = vdwg.mxu0
  %v598 = vld [vmem:[%s5] sm:$0xff]
  %v599 = vld [vmem:[%s5 + $0x8] sm:$0xff]
  %v600 = vld [vmem:[%s5 + $0x10] sm:$0xff]
  %v601 = vld [vmem:[%s5 + $0x18] sm:$0xff]
  %v602 = vld [vmem:[%s5 + $0x20] sm:$0xff]
  %v603 = vld [vmem:[%s5 + $0x28] sm:$0xff]
  %v604 = vld [vmem:[%s5 + $0x30] sm:$0xff]
  %v605 = vld [vmem:[%s5 + $0x38] sm:$0xff]
  %v606 = vadd.f32 %v487, %v598
  %v607 = vadd.f32 %v491, %v599
  %v608 = vadd.f32 %v497, %v600
  %v609 = vadd.f32 %v501, %v601
  %v610 = vadd.f32 %v507, %v602
  %v611 = vadd.f32 %v511, %v603
  %v612 = vadd.f32 %v517, %v604
  %v613 = vadd.f32 %v521, %v605
  %vm614 = vcmask 523264
  %v615 = vsel %vm614, %v606, -inf
  %616 = vmax.xlane.f32.xlu0 %v615
  %v617 = vpop.xlane.xlu0 %616
  %v618 = vsel %vm614, %v607, -inf
  %619 = vmax.xlane.f32.xlu0 %v618
  %v620 = vpop.xlane.xlu0 %619
  %v621 = vsel %vm614, %v608, -inf
  %622 = vmax.xlane.f32.xlu0 %v621
  %v623 = vpop.xlane.xlu0 %622
  %v624 = vsel %vm614, %v609, -inf
  %625 = vmax.xlane.f32.xlu0 %v624
  %v626 = vpop.xlane.xlu0 %625
  %v627 = vsel %vm614, %v610, -inf
  %628 = vmax.xlane.f32.xlu0 %v627
  %v629 = vpop.xlane.xlu0 %628
  %v630 = vsel %vm614, %v611, -inf
  %631 = vmax.xlane.f32.xlu0 %v630
  %v632 = vpop.xlane.xlu0 %631
  %v633 = vsel %vm614, %v612, -inf
  %634 = vmax.xlane.f32.xlu0 %v633
  %v635 = vpop.xlane.xlu0 %634
  %v636 = vsel %vm614, %v613, -inf
  %637 = vmax.xlane.f32.xlu0 %v636
  %v638 = vpop.xlane.xlu0 %637
  %v639 = vsub.f32 %v606, %v617
  %v640 = vsub.f32 %v607, %v620
  %v641 = vsub.f32 %v608, %v623
  %v642 = vsub.f32 %v609, %v626
  %v643 = vsub.f32 %v610, %v629
  %v644 = vsub.f32 %v611, %v632
  %v645 = vsub.f32 %v612, %v635
  %v646 = vsub.f32 %v613, %v638
  %v647 = vmul.f32 %v639, 1.442695
  %v648 = vpow.pop %v647
  %v649 = vmul.f32 %v640, 1.442695
  %v650 = vpow.pop %v649
  %v651 = vmul.f32 %v641, 1.442695
  %v652 = vpow.pop %v651
  %v653 = vmul.f32 %v642, 1.442695
  %v654 = vpow.pop %v653
  %v655 = vmul.f32 %v643, 1.442695
  %v656 = vpow.pop %v655
  %v657 = vmul.f32 %v644, 1.442695
  %v658 = vpow.pop %v657
  %v659 = vmul.f32 %v645, 1.442695
  %v660 = vpow.pop %v659
  %v661 = vmul.f32 %v646, 1.442695
  %v662 = vpow.pop %v661
  %v663 = vsel %vm614, %v648, 0.0
  %664 = vadd.xlane.f32.xlu0 %v663
  %v665 = vpop.xlane.xlu0 %664
  %v666 = vsel %vm614, %v650, 0.0
  %667 = vadd.xlane.f32.xlu0 %v666
  %v668 = vpop.xlane.xlu0 %667
  %v669 = vsel %vm614, %v652, 0.0
  %670 = vadd.xlane.f32.xlu0 %v669
  %v671 = vpop.xlane.xlu0 %670
  %v672 = vsel %vm614, %v654, 0.0
  %673 = vadd.xlane.f32.xlu0 %v672
  %v674 = vpop.xlane.xlu0 %673
  %v675 = vsel %vm614, %v656, 0.0
  %676 = vadd.xlane.f32.xlu0 %v675
  %v677 = vpop.xlane.xlu0 %676
  %v678 = vsel %vm614, %v658, 0.0
  %679 = vadd.xlane.f32.xlu0 %v678
  %v680 = vpop.xlane.xlu0 %679
  %v681 = vsel %vm614, %v660, 0.0
  %682 = vadd.xlane.f32.xlu0 %v681
  %v683 = vpop.xlane.xlu0 %682
  %v684 = vsel %vm614, %v662, 0.0
  %685 = vadd.xlane.f32.xlu0 %v684
  %v686 = vpop.xlane.xlu0 %685
  %v687 = vrcp.pop %v665
  %v688 = vrcp.pop %v668
  %v689 = vrcp.pop %v671
  %v690 = vrcp.pop %v674
  %v691 = vrcp.pop %v677
  %v692 = vrcp.pop %v680
  %v693 = vrcp.pop %v683
  %v694 = vrcp.pop %v686
  %v695 = vmul.f32 %v648, %v687
  %v696 = vmul.f32 %v650, %v688
  %v697 = vmul.f32 %v652, %v689
  %v698 = vmul.f32 %v654, %v690
  %v699 = vmul.f32 %v656, %v691
  %v700 = vmul.f32 %v658, %v692
  %v701 = vmul.f32 %v660, %v693
  %v702 = vmul.f32 %v662, %v694
  %v703 = vpack.c.bf16 %v696, %v695
  %v704 = vpack.c.bf16 %v698, %v697
  %v705 = vpack.c.bf16 %v700, %v699
  %v706 = vpack.c.bf16 %v702, %v701
  %715 = vrot.lane.b32.xlu0 %v598, 64
  %v716 = vpop.permute.xlu0 %715
  %717 = vrot.lane.b32.xlu0 %v599, 64
  %v718 = vpop.permute.xlu0 %717
  %719 = vrot.lane.b32.xlu0 %v600, 64
  %v720 = vpop.permute.xlu0 %719
  %721 = vrot.lane.b32.xlu0 %v601, 64
  %v722 = vpop.permute.xlu0 %721
  %723 = vrot.lane.b32.xlu0 %v602, 64
  %v724 = vpop.permute.xlu0 %723
  %725 = vrot.lane.b32.xlu0 %v603, 64
  %v726 = vpop.permute.xlu0 %725
  %727 = vrot.lane.b32.xlu0 %v604, 64
  %v728 = vpop.permute.xlu0 %727
  %729 = vrot.lane.b32.xlu0 %v605, 64
  %v730 = vpop.permute.xlu0 %729
  %v739 = vadd.f32 %v487, %v716
  %v740 = vadd.f32 %v491, %v718
  %v741 = vadd.f32 %v497, %v720
  %v742 = vadd.f32 %v501, %v722
  %v743 = vadd.f32 %v507, %v724
  %v744 = vadd.f32 %v511, %v726
  %v745 = vadd.f32 %v517, %v728
  %v746 = vadd.f32 %v521, %v730
  %vm747 = vcmask 1048064
  %v748 = vsel %vm747, %v739, -inf
  %749 = vmax.xlane.f32.xlu0 %v748
  %v750 = vpop.xlane.xlu0 %749
  %v751 = vsel %vm747, %v740, -inf
  %752 = vmax.xlane.f32.xlu0 %v751
  %v753 = vpop.xlane.xlu0 %752
  %v754 = vsel %vm747, %v741, -inf
  %755 = vmax.xlane.f32.xlu0 %v754
  %v756 = vpop.xlane.xlu0 %755
  %v757 = vsel %vm747, %v742, -inf
  %758 = vmax.xlane.f32.xlu0 %v757
  %v759 = vpop.xlane.xlu0 %758
  %v760 = vsel %vm747, %v743, -inf
  %761 = vmax.xlane.f32.xlu0 %v760
  %v762 = vpop.xlane.xlu0 %761
  %v763 = vsel %vm747, %v744, -inf
  %764 = vmax.xlane.f32.xlu0 %v763
  %v765 = vpop.xlane.xlu0 %764
  %v766 = vsel %vm747, %v745, -inf
  %767 = vmax.xlane.f32.xlu0 %v766
  %v768 = vpop.xlane.xlu0 %767
  %v769 = vsel %vm747, %v746, -inf
  %770 = vmax.xlane.f32.xlu0 %v769
  %v771 = vpop.xlane.xlu0 %770
  %v772 = vsub.f32 %v739, %v750
  %v773 = vsub.f32 %v740, %v753
  %v774 = vsub.f32 %v741, %v756
  %v775 = vsub.f32 %v742, %v759
  %v776 = vsub.f32 %v743, %v762
  %v777 = vsub.f32 %v744, %v765
  %v778 = vsub.f32 %v745, %v768
  %v779 = vsub.f32 %v746, %v771
  %v780 = vmul.f32 %v772, 1.442695
  %v781 = vpow.pop %v780
  %v782 = vmul.f32 %v773, 1.442695
  %v783 = vpow.pop %v782
  %v784 = vmul.f32 %v774, 1.442695
  %v785 = vpow.pop %v784
  %v786 = vmul.f32 %v775, 1.442695
  %v787 = vpow.pop %v786
  %v788 = vmul.f32 %v776, 1.442695
  %v789 = vpow.pop %v788
  %v790 = vmul.f32 %v777, 1.442695
  %v791 = vpow.pop %v790
  %v792 = vmul.f32 %v778, 1.442695
  %v793 = vpow.pop %v792
  %v794 = vmul.f32 %v779, 1.442695
  %v795 = vpow.pop %v794
  %804 = vrot.lane.b32.xlu0 %v781, 64
  %v805 = vpop.permute.xlu0 %804
  %806 = vrot.lane.b32.xlu0 %v783, 64
  %v807 = vpop.permute.xlu0 %806
  %808 = vrot.lane.b32.xlu0 %v785, 64
  %v809 = vpop.permute.xlu0 %808
  %810 = vrot.lane.b32.xlu0 %v787, 64
  %v811 = vpop.permute.xlu0 %810
  %812 = vrot.lane.b32.xlu0 %v789, 64
  %v813 = vpop.permute.xlu0 %812
  %814 = vrot.lane.b32.xlu0 %v791, 64
  %v815 = vpop.permute.xlu0 %814
  %816 = vrot.lane.b32.xlu0 %v793, 64
  %v817 = vpop.permute.xlu0 %816
  %818 = vrot.lane.b32.xlu0 %v795, 64
  %v819 = vpop.permute.xlu0 %818
  %v828 = vsel %vm614, %v805, 0.0
  %829 = vadd.xlane.f32.xlu0 %v828
  %v830 = vpop.xlane.xlu0 %829
  %v831 = vsel %vm614, %v807, 0.0
  %832 = vadd.xlane.f32.xlu0 %v831
  %v833 = vpop.xlane.xlu0 %832
  %v834 = vsel %vm614, %v809, 0.0
  %835 = vadd.xlane.f32.xlu0 %v834
  %v836 = vpop.xlane.xlu0 %835
  %v837 = vsel %vm614, %v811, 0.0
  %838 = vadd.xlane.f32.xlu0 %v837
  %v839 = vpop.xlane.xlu0 %838
  %v840 = vsel %vm614, %v813, 0.0
  %841 = vadd.xlane.f32.xlu0 %v840
  %v842 = vpop.xlane.xlu0 %841
  %v843 = vsel %vm614, %v815, 0.0
  %844 = vadd.xlane.f32.xlu0 %v843
  %v845 = vpop.xlane.xlu0 %844
  %v846 = vsel %vm614, %v817, 0.0
  %847 = vadd.xlane.f32.xlu0 %v846
  %v848 = vpop.xlane.xlu0 %847
  %v849 = vsel %vm614, %v819, 0.0
  %850 = vadd.xlane.f32.xlu0 %v849
  %v851 = vpop.xlane.xlu0 %850
  %v852 = vrcp.pop %v830
  %v853 = vrcp.pop %v833
  %v854 = vrcp.pop %v836
  %v855 = vrcp.pop %v839
  %v856 = vrcp.pop %v842
  %v857 = vrcp.pop %v845
  %v858 = vrcp.pop %v848
  %v859 = vrcp.pop %v851
  %v860 = vmul.f32 %v781, %v852
  %v861 = vmul.f32 %v783, %v853
  %v862 = vmul.f32 %v785, %v854
  %v863 = vmul.f32 %v787, %v855
  %v864 = vmul.f32 %v789, %v856
  %v865 = vmul.f32 %v791, %v857
  %v866 = vmul.f32 %v793, %v858
  %v867 = vmul.f32 %v795, %v859
  %v868 = vpack.c.bf16 %v861, %v860
  %v869 = vpack.c.bf16 %v863, %v862
  %v870 = vpack.c.bf16 %v865, %v864
  %v871 = vpack.c.bf16 %v867, %v866
  %v872 = vadd.f32 %v489, %v598
  %v873 = vadd.f32 %v493, %v599
  %v874 = vadd.f32 %v499, %v600
  %v875 = vadd.f32 %v503, %v601
  %v876 = vadd.f32 %v509, %v602
  %v877 = vadd.f32 %v513, %v603
  %v878 = vadd.f32 %v519, %v604
  %v879 = vadd.f32 %v523, %v605
  %v880 = vsel %vm614, %v872, -inf
  %881 = vmax.xlane.f32.xlu0 %v880
  %v882 = vpop.xlane.xlu0 %881
  %v883 = vsel %vm614, %v873, -inf
  %884 = vmax.xlane.f32.xlu0 %v883
  %v885 = vpop.xlane.xlu0 %884
  %v886 = vsel %vm614, %v874, -inf
  %887 = vmax.xlane.f32.xlu0 %v886
  %v888 = vpop.xlane.xlu0 %887
  %v889 = vsel %vm614, %v875, -inf
  %890 = vmax.xlane.f32.xlu0 %v889
  %v891 = vpop.xlane.xlu0 %890
  %v892 = vsel %vm614, %v876, -inf
  %893 = vmax.xlane.f32.xlu0 %v892
  %v894 = vpop.xlane.xlu0 %893
  %v895 = vsel %vm614, %v877, -inf
  %896 = vmax.xlane.f32.xlu0 %v895
  %v897 = vpop.xlane.xlu0 %896
  %v898 = vsel %vm614, %v878, -inf
  %899 = vmax.xlane.f32.xlu0 %v898
  %v900 = vpop.xlane.xlu0 %899
  %v901 = vsel %vm614, %v879, -inf
  %902 = vmax.xlane.f32.xlu0 %v901
  %v903 = vpop.xlane.xlu0 %902
  %v904 = vsub.f32 %v872, %v882
  %v905 = vsub.f32 %v873, %v885
  %v906 = vsub.f32 %v874, %v888
  %v907 = vsub.f32 %v875, %v891
  %v908 = vsub.f32 %v876, %v894
  %v909 = vsub.f32 %v877, %v897
  %v910 = vsub.f32 %v878, %v900
  %v911 = vsub.f32 %v879, %v903
  %v912 = vmul.f32 %v904, 1.442695
  %v913 = vpow.pop %v912
  %v914 = vmul.f32 %v905, 1.442695
  %v915 = vpow.pop %v914
  %v916 = vmul.f32 %v906, 1.442695
  %v917 = vpow.pop %v916
  %v918 = vmul.f32 %v907, 1.442695
  %v919 = vpow.pop %v918
  %v920 = vmul.f32 %v908, 1.442695
  %v921 = vpow.pop %v920
  %v922 = vmul.f32 %v909, 1.442695
  %v923 = vpow.pop %v922
  %v924 = vmul.f32 %v910, 1.442695
  %v925 = vpow.pop %v924
  %v926 = vmul.f32 %v911, 1.442695
  %v927 = vpow.pop %v926
  %v928 = vsel %vm614, %v913, 0.0
  %929 = vadd.xlane.f32.xlu0 %v928
  %v930 = vpop.xlane.xlu0 %929
  %v931 = vsel %vm614, %v915, 0.0
  %932 = vadd.xlane.f32.xlu0 %v931
  %v933 = vpop.xlane.xlu0 %932
  %v934 = vsel %vm614, %v917, 0.0
  %935 = vadd.xlane.f32.xlu0 %v934
  %v936 = vpop.xlane.xlu0 %935
  %v937 = vsel %vm614, %v919, 0.0
  %938 = vadd.xlane.f32.xlu0 %v937
  %v939 = vpop.xlane.xlu0 %938
  %v940 = vsel %vm614, %v921, 0.0
  %941 = vadd.xlane.f32.xlu0 %v940
  %v942 = vpop.xlane.xlu0 %941
  %v943 = vsel %vm614, %v923, 0.0
  %944 = vadd.xlane.f32.xlu0 %v943
  %v945 = vpop.xlane.xlu0 %944
  %v946 = vsel %vm614, %v925, 0.0
  %947 = vadd.xlane.f32.xlu0 %v946
  %v948 = vpop.xlane.xlu0 %947
  %v949 = vsel %vm614, %v927, 0.0
  %950 = vadd.xlane.f32.xlu0 %v949
  %v951 = vpop.xlane.xlu0 %950
  %v952 = vrcp.pop %v930
  %v953 = vrcp.pop %v933
  %v954 = vrcp.pop %v936
  %v955 = vrcp.pop %v939
  %v956 = vrcp.pop %v942
  %v957 = vrcp.pop %v945
  %v958 = vrcp.pop %v948
  %v959 = vrcp.pop %v951
  %v960 = vmul.f32 %v913, %v952
  %v961 = vmul.f32 %v915, %v953
  %v962 = vmul.f32 %v917, %v954
  %v963 = vmul.f32 %v919, %v955
  %v964 = vmul.f32 %v921, %v956
  %v965 = vmul.f32 %v923, %v957
  %v966 = vmul.f32 %v925, %v958
  %v967 = vmul.f32 %v927, %v959
  %v968 = vpack.c.bf16 %v961, %v960
  %v969 = vpack.c.bf16 %v963, %v962
  %v970 = vpack.c.bf16 %v965, %v964
  %v971 = vpack.c.bf16 %v967, %v966
  %v972 = vadd.f32 %v489, %v716
  %v973 = vadd.f32 %v493, %v718
  %v974 = vadd.f32 %v499, %v720
  %v975 = vadd.f32 %v503, %v722
  %v976 = vadd.f32 %v509, %v724
  %v977 = vadd.f32 %v513, %v726
  %v978 = vadd.f32 %v519, %v728
  %v979 = vadd.f32 %v523, %v730
  %v980 = vsel %vm747, %v972, -inf
  %981 = vmax.xlane.f32.xlu0 %v980
  %v982 = vpop.xlane.xlu0 %981
  %v983 = vsel %vm747, %v973, -inf
  %984 = vmax.xlane.f32.xlu0 %v983
  %v985 = vpop.xlane.xlu0 %984
  %v986 = vsel %vm747, %v974, -inf
  %987 = vmax.xlane.f32.xlu0 %v986
  %v988 = vpop.xlane.xlu0 %987
  %v989 = vsel %vm747, %v975, -inf
  %990 = vmax.xlane.f32.xlu0 %v989
  %v991 = vpop.xlane.xlu0 %990
  %v992 = vsel %vm747, %v976, -inf
  %993 = vmax.xlane.f32.xlu0 %v992
  %v994 = vpop.xlane.xlu0 %993
  %v995 = vsel %vm747, %v977, -inf
  %996 = vmax.xlane.f32.xlu0 %v995
  %v997 = vpop.xlane.xlu0 %996
  %v998 = vsel %vm747, %v978, -inf
  %999 = vmax.xlane.f32.xlu0 %v998
  %v1000 = vpop.xlane.xlu0 %999
  %v1001 = vsel %vm747, %v979, -inf
  %1002 = vmax.xlane.f32.xlu0 %v1001
  %v1003 = vpop.xlane.xlu0 %1002
  %v1004 = vsub.f32 %v972, %v982
  %v1005 = vsub.f32 %v973, %v985
  %v1006 = vsub.f32 %v974, %v988
  %v1007 = vsub.f32 %v975, %v991
  %v1008 = vsub.f32 %v976, %v994
  %v1009 = vsub.f32 %v977, %v997
  %v1010 = vsub.f32 %v978, %v1000
  %v1011 = vsub.f32 %v979, %v1003
  %v1012 = vmul.f32 %v1004, 1.442695
  %v1013 = vpow.pop %v1012
  %v1014 = vmul.f32 %v1005, 1.442695
  %v1015 = vpow.pop %v1014
  %v1016 = vmul.f32 %v1006, 1.442695
  %v1017 = vpow.pop %v1016
  %v1018 = vmul.f32 %v1007, 1.442695
  %v1019 = vpow.pop %v1018
  %v1020 = vmul.f32 %v1008, 1.442695
  %v1021 = vpow.pop %v1020
  %v1022 = vmul.f32 %v1009, 1.442695
  %v1023 = vpow.pop %v1022
  %v1024 = vmul.f32 %v1010, 1.442695
  %v1025 = vpow.pop %v1024
  %v1026 = vmul.f32 %v1011, 1.442695
  %v1027 = vpow.pop %v1026
  %1036 = vrot.lane.b32.xlu0 %v1013, 64
  %v1037 = vpop.permute.xlu0 %1036
  %1038 = vrot.lane.b32.xlu0 %v1015, 64
  %v1039 = vpop.permute.xlu0 %1038
  %1040 = vrot.lane.b32.xlu0 %v1017, 64
  %v1041 = vpop.permute.xlu0 %1040
  %1042 = vrot.lane.b32.xlu0 %v1019, 64
  %v1043 = vpop.permute.xlu0 %1042
  %1044 = vrot.lane.b32.xlu0 %v1021, 64
  %v1045 = vpop.permute.xlu0 %1044
  %1046 = vrot.lane.b32.xlu0 %v1023, 64
  %v1047 = vpop.permute.xlu0 %1046
  %1048 = vrot.lane.b32.xlu0 %v1025, 64
  %v1049 = vpop.permute.xlu0 %1048
  %1050 = vrot.lane.b32.xlu0 %v1027, 64
  %v1051 = vpop.permute.xlu0 %1050
  %v1060 = vsel %vm614, %v1037, 0.0
  %1061 = vadd.xlane.f32.xlu0 %v1060
  %v1062 = vpop.xlane.xlu0 %1061
  %v1063 = vsel %vm614, %v1039, 0.0
  %1064 = vadd.xlane.f32.xlu0 %v1063
  %v1065 = vpop.xlane.xlu0 %1064
  %v1066 = vsel %vm614, %v1041, 0.0
  %1067 = vadd.xlane.f32.xlu0 %v1066
  %v1068 = vpop.xlane.xlu0 %1067
  %v1069 = vsel %vm614, %v1043, 0.0
  %1070 = vadd.xlane.f32.xlu0 %v1069
  %v1071 = vpop.xlane.xlu0 %1070
  %v1072 = vsel %vm614, %v1045, 0.0
  %1073 = vadd.xlane.f32.xlu0 %v1072
  %v1074 = vpop.xlane.xlu0 %1073
  %v1075 = vsel %vm614, %v1047, 0.0
  %1076 = vadd.xlane.f32.xlu0 %v1075
  %v1077 = vpop.xlane.xlu0 %1076
  %v1078 = vsel %vm614, %v1049, 0.0
  %1079 = vadd.xlane.f32.xlu0 %v1078
  %v1080 = vpop.xlane.xlu0 %1079
  %v1081 = vsel %vm614, %v1051, 0.0
  %1082 = vadd.xlane.f32.xlu0 %v1081
  %v1083 = vpop.xlane.xlu0 %1082
  %v1084 = vrcp.pop %v1062
  %v1085 = vrcp.pop %v1065
  %v1086 = vrcp.pop %v1068
  %v1087 = vrcp.pop %v1071
  %v1088 = vrcp.pop %v1074
  %v1089 = vrcp.pop %v1077
  %v1090 = vrcp.pop %v1080
  %v1091 = vrcp.pop %v1083
  %v1092 = vmul.f32 %v1013, %v1084
  %v1093 = vmul.f32 %v1015, %v1085
  %v1094 = vmul.f32 %v1017, %v1086
  %v1095 = vmul.f32 %v1019, %v1087
  %v1096 = vmul.f32 %v1021, %v1088
  %v1097 = vmul.f32 %v1023, %v1089
  %v1098 = vmul.f32 %v1025, %v1090
  %v1099 = vmul.f32 %v1027, %v1091
  %v1100 = vpack.c.bf16 %v1093, %v1092
  %v1101 = vpack.c.bf16 %v1095, %v1094
  %v1102 = vpack.c.bf16 %v1097, %v1096
  %v1103 = vpack.c.bf16 %v1099, %v1098
  %v1104 = vadd.f32 %v560, %v598
  %v1105 = vadd.f32 %v564, %v599
  %v1106 = vadd.f32 %v570, %v600
  %v1107 = vadd.f32 %v574, %v601
  %v1108 = vadd.f32 %v580, %v602
  %v1109 = vadd.f32 %v584, %v603
  %v1110 = vadd.f32 %v590, %v604
  %v1111 = vadd.f32 %v594, %v605
  %v1112 = vsel %vm614, %v1104, -inf
  %1113 = vmax.xlane.f32.xlu0 %v1112
  %v1114 = vpop.xlane.xlu0 %1113
  %v1115 = vsel %vm614, %v1105, -inf
  %1116 = vmax.xlane.f32.xlu0 %v1115
  %v1117 = vpop.xlane.xlu0 %1116
  %v1118 = vsel %vm614, %v1106, -inf
  %1119 = vmax.xlane.f32.xlu0 %v1118
  %v1120 = vpop.xlane.xlu0 %1119
  %v1121 = vsel %vm614, %v1107, -inf
  %1122 = vmax.xlane.f32.xlu0 %v1121
  %v1123 = vpop.xlane.xlu0 %1122
  %v1124 = vsel %vm614, %v1108, -inf
  %1125 = vmax.xlane.f32.xlu0 %v1124
  %v1126 = vpop.xlane.xlu0 %1125
  %v1127 = vsel %vm614, %v1109, -inf
  %1128 = vmax.xlane.f32.xlu0 %v1127
  %v1129 = vpop.xlane.xlu0 %1128
  %v1130 = vsel %vm614, %v1110, -inf
  %1131 = vmax.xlane.f32.xlu0 %v1130
  %v1132 = vpop.xlane.xlu0 %1131
  %v1133 = vsel %vm614, %v1111, -inf
  %1134 = vmax.xlane.f32.xlu0 %v1133
  %v1135 = vpop.xlane.xlu0 %1134
  %v1136 = vsub.f32 %v1104, %v1114
  %v1137 = vsub.f32 %v1105, %v1117
  %v1138 = vsub.f32 %v1106, %v1120
  %v1139 = vsub.f32 %v1107, %v1123
  %v1140 = vsub.f32 %v1108, %v1126
  %v1141 = vsub.f32 %v1109, %v1129
  %v1142 = vsub.f32 %v1110, %v1132
  %v1143 = vsub.f32 %v1111, %v1135
  %v1144 = vmul.f32 %v1136, 1.442695
  %v1145 = vpow.pop %v1144
  %v1146 = vmul.f32 %v1137, 1.442695
  %v1147 = vpow.pop %v1146
  %v1148 = vmul.f32 %v1138, 1.442695
  %v1149 = vpow.pop %v1148
  %v1150 = vmul.f32 %v1139, 1.442695
  %v1151 = vpow.pop %v1150
  %v1152 = vmul.f32 %v1140, 1.442695
  %v1153 = vpow.pop %v1152
  %v1154 = vmul.f32 %v1141, 1.442695
  %v1155 = vpow.pop %v1154
  %v1156 = vmul.f32 %v1142, 1.442695
  %v1157 = vpow.pop %v1156
  %v1158 = vmul.f32 %v1143, 1.442695
  %v1159 = vpow.pop %v1158
  %v1160 = vsel %vm614, %v1145, 0.0
  %1161 = vadd.xlane.f32.xlu0 %v1160
  %v1162 = vpop.xlane.xlu0 %1161
  %v1163 = vsel %vm614, %v1147, 0.0
  %1164 = vadd.xlane.f32.xlu0 %v1163
  %v1165 = vpop.xlane.xlu0 %1164
  %v1166 = vsel %vm614, %v1149, 0.0
  %1167 = vadd.xlane.f32.xlu0 %v1166
  %v1168 = vpop.xlane.xlu0 %1167
  %v1169 = vsel %vm614, %v1151, 0.0
  %1170 = vadd.xlane.f32.xlu0 %v1169
  %v1171 = vpop.xlane.xlu0 %1170
  %v1172 = vsel %vm614, %v1153, 0.0
  %1173 = vadd.xlane.f32.xlu0 %v1172
  %v1174 = vpop.xlane.xlu0 %1173
  %v1175 = vsel %vm614, %v1155, 0.0
  %1176 = vadd.xlane.f32.xlu0 %v1175
  %v1177 = vpop.xlane.xlu0 %1176
  %v1178 = vsel %vm614, %v1157, 0.0
  %1179 = vadd.xlane.f32.xlu0 %v1178
  %v1180 = vpop.xlane.xlu0 %1179
  %v1181 = vsel %vm614, %v1159, 0.0
  %1182 = vadd.xlane.f32.xlu0 %v1181
  %v1183 = vpop.xlane.xlu0 %1182
  %v1184 = vrcp.pop %v1162
  %v1185 = vrcp.pop %v1165
  %v1186 = vrcp.pop %v1168
  %v1187 = vrcp.pop %v1171
  %v1188 = vrcp.pop %v1174
  %v1189 = vrcp.pop %v1177
  %v1190 = vrcp.pop %v1180
  %v1191 = vrcp.pop %v1183
  %v1192 = vmul.f32 %v1145, %v1184
  %v1193 = vmul.f32 %v1147, %v1185
  %v1194 = vmul.f32 %v1149, %v1186
  %v1195 = vmul.f32 %v1151, %v1187
  %v1196 = vmul.f32 %v1153, %v1188
  %v1197 = vmul.f32 %v1155, %v1189
  %v1198 = vmul.f32 %v1157, %v1190
  %v1199 = vmul.f32 %v1159, %v1191
  %v1200 = vpack.c.bf16 %v1193, %v1192
  %v1201 = vpack.c.bf16 %v1195, %v1194
  %v1202 = vpack.c.bf16 %v1197, %v1196
  %v1203 = vpack.c.bf16 %v1199, %v1198
  %v1204 = vadd.f32 %v560, %v716
  %v1205 = vadd.f32 %v564, %v718
  %v1206 = vadd.f32 %v570, %v720
  %v1207 = vadd.f32 %v574, %v722
  %v1208 = vadd.f32 %v580, %v724
  %v1209 = vadd.f32 %v584, %v726
  %v1210 = vadd.f32 %v590, %v728
  %v1211 = vadd.f32 %v594, %v730
  %v1212 = vsel %vm747, %v1204, -inf
  %1213 = vmax.xlane.f32.xlu0 %v1212
  %v1214 = vpop.xlane.xlu0 %1213
  %v1215 = vsel %vm747, %v1205, -inf
  %1216 = vmax.xlane.f32.xlu0 %v1215
  %v1217 = vpop.xlane.xlu0 %1216
  %v1218 = vsel %vm747, %v1206, -inf
  %1219 = vmax.xlane.f32.xlu0 %v1218
  %v1220 = vpop.xlane.xlu0 %1219
  %v1221 = vsel %vm747, %v1207, -inf
  %1222 = vmax.xlane.f32.xlu0 %v1221
  %v1223 = vpop.xlane.xlu0 %1222
  %v1224 = vsel %vm747, %v1208, -inf
  %1225 = vmax.xlane.f32.xlu0 %v1224
  %v1226 = vpop.xlane.xlu0 %1225
  %v1227 = vsel %vm747, %v1209, -inf
  %1228 = vmax.xlane.f32.xlu0 %v1227
  %v1229 = vpop.xlane.xlu0 %1228
  %v1230 = vsel %vm747, %v1210, -inf
  %1231 = vmax.xlane.f32.xlu0 %v1230
  %v1232 = vpop.xlane.xlu0 %1231
  %v1233 = vsel %vm747, %v1211, -inf
  %1234 = vmax.xlane.f32.xlu0 %v1233
  %v1235 = vpop.xlane.xlu0 %1234
  %v1236 = vsub.f32 %v1204, %v1214
  %v1237 = vsub.f32 %v1205, %v1217
  %v1238 = vsub.f32 %v1206, %v1220
  %v1239 = vsub.f32 %v1207, %v1223
  %v1240 = vsub.f32 %v1208, %v1226
  %v1241 = vsub.f32 %v1209, %v1229
  %v1242 = vsub.f32 %v1210, %v1232
  %v1243 = vsub.f32 %v1211, %v1235
  %v1244 = vmul.f32 %v1236, 1.442695
  %v1245 = vpow.pop %v1244
  %v1246 = vmul.f32 %v1237, 1.442695
  %v1247 = vpow.pop %v1246
  %v1248 = vmul.f32 %v1238, 1.442695
  %v1249 = vpow.pop %v1248
  %v1250 = vmul.f32 %v1239, 1.442695
  %v1251 = vpow.pop %v1250
  %v1252 = vmul.f32 %v1240, 1.442695
  %v1253 = vpow.pop %v1252
  %v1254 = vmul.f32 %v1241, 1.442695
  %v1255 = vpow.pop %v1254
  %v1256 = vmul.f32 %v1242, 1.442695
  %v1257 = vpow.pop %v1256
  %v1258 = vmul.f32 %v1243, 1.442695
  %v1259 = vpow.pop %v1258
  %1268 = vrot.lane.b32.xlu0 %v1245, 64
  %v1269 = vpop.permute.xlu0 %1268
  %1270 = vrot.lane.b32.xlu0 %v1247, 64
  %v1271 = vpop.permute.xlu0 %1270
  %1272 = vrot.lane.b32.xlu0 %v1249, 64
  %v1273 = vpop.permute.xlu0 %1272
  %1274 = vrot.lane.b32.xlu0 %v1251, 64
  %v1275 = vpop.permute.xlu0 %1274
  %1276 = vrot.lane.b32.xlu0 %v1253, 64
  %v1277 = vpop.permute.xlu0 %1276
  %1278 = vrot.lane.b32.xlu0 %v1255, 64
  %v1279 = vpop.permute.xlu0 %1278
  %1280 = vrot.lane.b32.xlu0 %v1257, 64
  %v1281 = vpop.permute.xlu0 %1280
  %1282 = vrot.lane.b32.xlu0 %v1259, 64
  %v1283 = vpop.permute.xlu0 %1282
  %v1292 = vsel %vm614, %v1269, 0.0
  %1293 = vadd.xlane.f32.xlu0 %v1292
  %v1294 = vpop.xlane.xlu0 %1293
  %v1295 = vsel %vm614, %v1271, 0.0
  %1296 = vadd.xlane.f32.xlu0 %v1295
  %v1297 = vpop.xlane.xlu0 %1296
  %v1298 = vsel %vm614, %v1273, 0.0
  %1299 = vadd.xlane.f32.xlu0 %v1298
  %v1300 = vpop.xlane.xlu0 %1299
  %v1301 = vsel %vm614, %v1275, 0.0
  %1302 = vadd.xlane.f32.xlu0 %v1301
  %v1303 = vpop.xlane.xlu0 %1302
  %v1304 = vsel %vm614, %v1277, 0.0
  %1305 = vadd.xlane.f32.xlu0 %v1304
  %v1306 = vpop.xlane.xlu0 %1305
  %v1307 = vsel %vm614, %v1279, 0.0
  %1308 = vadd.xlane.f32.xlu0 %v1307
  %v1309 = vpop.xlane.xlu0 %1308
  %v1310 = vsel %vm614, %v1281, 0.0
  %1311 = vadd.xlane.f32.xlu0 %v1310
  %v1312 = vpop.xlane.xlu0 %1311
  %v1313 = vsel %vm614, %v1283, 0.0
  %1314 = vadd.xlane.f32.xlu0 %v1313
  %v1315 = vpop.xlane.xlu0 %1314
  %v1316 = vrcp.pop %v1294
  %v1317 = vrcp.pop %v1297
  %v1318 = vrcp.pop %v1300
  %v1319 = vrcp.pop %v1303
  %v1320 = vrcp.pop %v1306
  %v1321 = vrcp.pop %v1309
  %v1322 = vrcp.pop %v1312
  %v1323 = vrcp.pop %v1315
  %v1324 = vmul.f32 %v1245, %v1316
  %v1325 = vmul.f32 %v1247, %v1317
  %v1326 = vmul.f32 %v1249, %v1318
  %v1327 = vmul.f32 %v1251, %v1319
  %v1328 = vmul.f32 %v1253, %v1320
  %v1329 = vmul.f32 %v1255, %v1321
  %v1330 = vmul.f32 %v1257, %v1322
  %v1331 = vmul.f32 %v1259, %v1323
  %v1332 = vpack.c.bf16 %v1325, %v1324
  %v1333 = vpack.c.bf16 %v1327, %v1326
  %v1334 = vpack.c.bf16 %v1329, %v1328
  %v1335 = vpack.c.bf16 %v1331, %v1330
  %v1336 = vadd.f32 %v562, %v598
  %v1337 = vadd.f32 %v566, %v599
  %v1338 = vadd.f32 %v572, %v600
  %v1339 = vadd.f32 %v576, %v601
  %v1340 = vadd.f32 %v582, %v602
  %v1341 = vadd.f32 %v586, %v603
  %v1342 = vadd.f32 %v592, %v604
  %v1343 = vadd.f32 %v596, %v605
  %v1344 = vsel %vm614, %v1336, -inf
  %1345 = vmax.xlane.f32.xlu0 %v1344
  %v1346 = vpop.xlane.xlu0 %1345
  %v1347 = vsel %vm614, %v1337, -inf
  %1348 = vmax.xlane.f32.xlu0 %v1347
  %v1349 = vpop.xlane.xlu0 %1348
  %v1350 = vsel %vm614, %v1338, -inf
  %1351 = vmax.xlane.f32.xlu0 %v1350
  %v1352 = vpop.xlane.xlu0 %1351
  %v1353 = vsel %vm614, %v1339, -inf
  %1354 = vmax.xlane.f32.xlu0 %v1353
  %v1355 = vpop.xlane.xlu0 %1354
  %v1356 = vsel %vm614, %v1340, -inf
  %1357 = vmax.xlane.f32.xlu0 %v1356
  %v1358 = vpop.xlane.xlu0 %1357
  %v1359 = vsel %vm614, %v1341, -inf
  %1360 = vmax.xlane.f32.xlu0 %v1359
  %v1361 = vpop.xlane.xlu0 %1360
  %v1362 = vsel %vm614, %v1342, -inf
  %1363 = vmax.xlane.f32.xlu0 %v1362
  %v1364 = vpop.xlane.xlu0 %1363
  %v1365 = vsel %vm614, %v1343, -inf
  %1366 = vmax.xlane.f32.xlu0 %v1365
  %v1367 = vpop.xlane.xlu0 %1366
  %v1368 = vsub.f32 %v1336, %v1346
  %v1369 = vsub.f32 %v1337, %v1349
  %v1370 = vsub.f32 %v1338, %v1352
  %v1371 = vsub.f32 %v1339, %v1355
  %v1372 = vsub.f32 %v1340, %v1358
  %v1373 = vsub.f32 %v1341, %v1361
  %v1374 = vsub.f32 %v1342, %v1364
  %v1375 = vsub.f32 %v1343, %v1367
  %v1376 = vmul.f32 %v1368, 1.442695
  %v1377 = vpow.pop %v1376
  %v1378 = vmul.f32 %v1369, 1.442695
  %v1379 = vpow.pop %v1378
  %v1380 = vmul.f32 %v1370, 1.442695
  %v1381 = vpow.pop %v1380
  %v1382 = vmul.f32 %v1371, 1.442695
  %v1383 = vpow.pop %v1382
  %v1384 = vmul.f32 %v1372, 1.442695
  %v1385 = vpow.pop %v1384
  %v1386 = vmul.f32 %v1373, 1.442695
  %v1387 = vpow.pop %v1386
  %v1388 = vmul.f32 %v1374, 1.442695
  %v1389 = vpow.pop %v1388
  %v1390 = vmul.f32 %v1375, 1.442695
  %v1391 = vpow.pop %v1390
  %v1392 = vsel %vm614, %v1377, 0.0
  %1393 = vadd.xlane.f32.xlu0 %v1392
  %v1394 = vpop.xlane.xlu0 %1393
  %v1395 = vsel %vm614, %v1379, 0.0
  %1396 = vadd.xlane.f32.xlu0 %v1395
  %v1397 = vpop.xlane.xlu0 %1396
  %v1398 = vsel %vm614, %v1381, 0.0
  %1399 = vadd.xlane.f32.xlu0 %v1398
  %v1400 = vpop.xlane.xlu0 %1399
  %v1401 = vsel %vm614, %v1383, 0.0
  %1402 = vadd.xlane.f32.xlu0 %v1401
  %v1403 = vpop.xlane.xlu0 %1402
  %v1404 = vsel %vm614, %v1385, 0.0
  %1405 = vadd.xlane.f32.xlu0 %v1404
  %v1406 = vpop.xlane.xlu0 %1405
  %v1407 = vsel %vm614, %v1387, 0.0
  %1408 = vadd.xlane.f32.xlu0 %v1407
  %v1409 = vpop.xlane.xlu0 %1408
  %v1410 = vsel %vm614, %v1389, 0.0
  %1411 = vadd.xlane.f32.xlu0 %v1410
  %v1412 = vpop.xlane.xlu0 %1411
  %v1413 = vsel %vm614, %v1391, 0.0
  %1414 = vadd.xlane.f32.xlu0 %v1413
  %v1415 = vpop.xlane.xlu0 %1414
  %v1416 = vrcp.pop %v1394
  %v1417 = vrcp.pop %v1397
  %v1418 = vrcp.pop %v1400
  %v1419 = vrcp.pop %v1403
  %v1420 = vrcp.pop %v1406
  %v1421 = vrcp.pop %v1409
  %v1422 = vrcp.pop %v1412
  %v1423 = vrcp.pop %v1415
  %v1424 = vmul.f32 %v1377, %v1416
  %v1425 = vmul.f32 %v1379, %v1417
  %v1426 = vmul.f32 %v1381, %v1418
  %v1427 = vmul.f32 %v1383, %v1419
  %v1428 = vmul.f32 %v1385, %v1420
  %v1429 = vmul.f32 %v1387, %v1421
  %v1430 = vmul.f32 %v1389, %v1422
  %v1431 = vmul.f32 %v1391, %v1423
  %v1432 = vpack.c.bf16 %v1425, %v1424
  %v1433 = vpack.c.bf16 %v1427, %v1426
  %v1434 = vpack.c.bf16 %v1429, %v1428
  %v1435 = vpack.c.bf16 %v1431, %v1430
  %v1436 = vadd.f32 %v562, %v716
  %v1437 = vadd.f32 %v566, %v718
  %v1438 = vadd.f32 %v572, %v720
  %v1439 = vadd.f32 %v576, %v722
  %v1440 = vadd.f32 %v582, %v724
  %v1441 = vadd.f32 %v586, %v726
  %v1442 = vadd.f32 %v592, %v728
  %v1443 = vadd.f32 %v596, %v730
  %v1444 = vsel %vm747, %v1436, -inf
  %1445 = vmax.xlane.f32.xlu0 %v1444
  %v1446 = vpop.xlane.xlu0 %1445
  %v1447 = vsel %vm747, %v1437, -inf
  %1448 = vmax.xlane.f32.xlu0 %v1447
  %v1449 = vpop.xlane.xlu0 %1448
  %v1450 = vsel %vm747, %v1438, -inf
  %1451 = vmax.xlane.f32.xlu0 %v1450
  %v1452 = vpop.xlane.xlu0 %1451
  %v1453 = vsel %vm747, %v1439, -inf
  %1454 = vmax.xlane.f32.xlu0 %v1453
  %v1455 = vpop.xlane.xlu0 %1454
  %v1456 = vsel %vm747, %v1440, -inf
  %1457 = vmax.xlane.f32.xlu0 %v1456
  %v1458 = vpop.xlane.xlu0 %1457
  %v1459 = vsel %vm747, %v1441, -inf
  %1460 = vmax.xlane.f32.xlu0 %v1459
  %v1461 = vpop.xlane.xlu0 %1460
  %v1462 = vsel %vm747, %v1442, -inf
  %1463 = vmax.xlane.f32.xlu0 %v1462
  %v1464 = vpop.xlane.xlu0 %1463
  %v1465 = vsel %vm747, %v1443, -inf
  %1466 = vmax.xlane.f32.xlu0 %v1465
  %v1467 = vpop.xlane.xlu0 %1466
  %v1468 = vsub.f32 %v1436, %v1446
  %v1469 = vsub.f32 %v1437, %v1449
  %v1470 = vsub.f32 %v1438, %v1452
  %v1471 = vsub.f32 %v1439, %v1455
  %v1472 = vsub.f32 %v1440, %v1458
  %v1473 = vsub.f32 %v1441, %v1461
  %v1474 = vsub.f32 %v1442, %v1464
  %v1475 = vsub.f32 %v1443, %v1467
  %v1476 = vmul.f32 %v1468, 1.442695
  %v1477 = vpow.pop %v1476
  %v1478 = vmul.f32 %v1469, 1.442695
  %v1479 = vpow.pop %v1478
  %v1480 = vmul.f32 %v1470, 1.442695
  %v1481 = vpow.pop %v1480
  %v1482 = vmul.f32 %v1471, 1.442695
  %v1483 = vpow.pop %v1482
  %v1484 = vmul.f32 %v1472, 1.442695
  %v1485 = vpow.pop %v1484
  %v1486 = vmul.f32 %v1473, 1.442695
  %v1487 = vpow.pop %v1486
  %v1488 = vmul.f32 %v1474, 1.442695
  %v1489 = vpow.pop %v1488
  %v1490 = vmul.f32 %v1475, 1.442695
  %v1491 = vpow.pop %v1490
  %1500 = vrot.lane.b32.xlu0 %v1477, 64
  %v1501 = vpop.permute.xlu0 %1500
  %1502 = vrot.lane.b32.xlu0 %v1479, 64
  %v1503 = vpop.permute.xlu0 %1502
  %1504 = vrot.lane.b32.xlu0 %v1481, 64
  %v1505 = vpop.permute.xlu0 %1504
  %1506 = vrot.lane.b32.xlu0 %v1483, 64
  %v1507 = vpop.permute.xlu0 %1506
  %1508 = vrot.lane.b32.xlu0 %v1485, 64
  %v1509 = vpop.permute.xlu0 %1508
  %1510 = vrot.lane.b32.xlu0 %v1487, 64
  %v1511 = vpop.permute.xlu0 %1510
  %1512 = vrot.lane.b32.xlu0 %v1489, 64
  %v1513 = vpop.permute.xlu0 %1512
  %1514 = vrot.lane.b32.xlu0 %v1491, 64
  %v1515 = vpop.permute.xlu0 %1514
  %v1524 = vsel %vm614, %v1501, 0.0
  %1525 = vadd.xlane.f32.xlu0 %v1524
  %v1526 = vpop.xlane.xlu0 %1525
  %v1527 = vsel %vm614, %v1503, 0.0
  %1528 = vadd.xlane.f32.xlu0 %v1527
  %v1529 = vpop.xlane.xlu0 %1528
  %v1530 = vsel %vm614, %v1505, 0.0
  %1531 = vadd.xlane.f32.xlu0 %v1530
  %v1532 = vpop.xlane.xlu0 %1531
  %v1533 = vsel %vm614, %v1507, 0.0
  %1534 = vadd.xlane.f32.xlu0 %v1533
  %v1535 = vpop.xlane.xlu0 %1534
  %v1536 = vsel %vm614, %v1509, 0.0
  %1537 = vadd.xlane.f32.xlu0 %v1536
  %v1538 = vpop.xlane.xlu0 %1537
  %v1539 = vsel %vm614, %v1511, 0.0
  %1540 = vadd.xlane.f32.xlu0 %v1539
  %v1541 = vpop.xlane.xlu0 %1540
  %v1542 = vsel %vm614, %v1513, 0.0
  %1543 = vadd.xlane.f32.xlu0 %v1542
  %v1544 = vpop.xlane.xlu0 %1543
  %v1545 = vsel %vm614, %v1515, 0.0
  %1546 = vadd.xlane.f32.xlu0 %v1545
  %v1547 = vpop.xlane.xlu0 %1546
  %v1548 = vrcp.pop %v1526
  %v1549 = vrcp.pop %v1529
  %v1550 = vrcp.pop %v1532
  %v1551 = vrcp.pop %v1535
  %v1552 = vrcp.pop %v1538
  %v1553 = vrcp.pop %v1541
  %v1554 = vrcp.pop %v1544
  %v1555 = vrcp.pop %v1547
  %v1556 = vmul.f32 %v1477, %v1548
  %v1557 = vmul.f32 %v1479, %v1549
  %v1558 = vmul.f32 %v1481, %v1550
  %v1559 = vmul.f32 %v1483, %v1551
  %v1560 = vmul.f32 %v1485, %v1552
  %v1561 = vmul.f32 %v1487, %v1553
  %v1562 = vmul.f32 %v1489, %v1554
  %v1563 = vmul.f32 %v1491, %v1555
  %v1564 = vpack.c.bf16 %v1557, %v1556
  %v1565 = vpack.c.bf16 %v1559, %v1558
  %v1566 = vpack.c.bf16 %v1561, %v1560
  %v1567 = vpack.c.bf16 %v1563, %v1562
  %v1570 = vsel %vm614, %v703, %v868
  %v1574 = vsel %vm614, %v704, %v869
  %v1578 = vsel %vm614, %v705, %v870
  %v1582 = vsel %vm614, %v706, %v871
  %v1586 = vsel %vm614, %v968, %v1100
  %v1590 = vsel %vm614, %v969, %v1101
  %v1594 = vsel %vm614, %v970, %v1102
  %v1598 = vsel %vm614, %v971, %v1103
  %v1602 = vsel %vm614, %v1200, %v1332
  %v1606 = vsel %vm614, %v1201, %v1333
  %v1610 = vsel %vm614, %v1202, %v1334
  %v1614 = vsel %vm614, %v1203, %v1335
  %v1618 = vsel %vm614, %v1432, %v1564
  %v1622 = vsel %vm614, %v1433, %v1565
  %v1626 = vsel %vm614, %v1434, %v1566
  %v1630 = vsel %vm614, %v1435, %v1567
  %1632 = vmatprep.subr.bf16.mxu0 0
  %1633 = vmatpush1.bf16.msra.mxu0 %v420
  %1634 = vmatprep.subr.bf16.mxu0 0
  %1635 = vmatpush1.bf16.msra.mxu0 %v421
  %1636 = vmatprep.subr.bf16.mxu0 0
  %1637 = vmatpush1.bf16.msra.mxu0 %v422
  %1638 = vmatprep.subr.bf16.mxu0 0
  %1639 = vmatpush1.bf16.msra.mxu0 %v423
  %1640 = vmatprep.subr.bf16.mxu0 0
  %1641 = vmatpush1.bf16.msra.mxu0 %v424
  %1642 = vmatprep.subr.bf16.mxu0 0
  %1643 = vmatpush1.bf16.msra.mxu0 %v425
  %1644 = vmatprep.subr.bf16.mxu0 0
  %1645 = vmatpush1.bf16.msra.mxu0 %v426
  %1646 = vmatprep.subr.bf16.mxu0 0
  %1647 = vmatpush1.bf16.msra.mxu0 %v427
  %1648 = vmatprep.subr.bf16.mxu0 0
  %1649 = vmatpush1.bf16.msra.mxu0 %v428
  %1650 = vmatprep.subr.bf16.mxu0 0
  %1651 = vmatpush1.bf16.msra.mxu0 %v429
  %1652 = vmatprep.subr.bf16.mxu0 0
  %1653 = vmatpush1.bf16.msra.mxu0 %v430
  %1654 = vmatprep.subr.bf16.mxu0 0
  %1655 = vmatpush1.bf16.msra.mxu0 %v431
  %1656 = vmatprep.subr.bf16.mxu0 0
  %1657 = vmatpush1.bf16.msra.mxu0 %v432
  %1658 = vmatprep.subr.bf16.mxu0 0
  %1659 = vmatpush1.bf16.msra.mxu0 %v433
  %1660 = vmatprep.subr.bf16.mxu0 0
  %1661 = vmatpush1.bf16.msra.mxu0 %v434
  %1662 = vmatprep.subr.bf16.mxu0 0
  %1663 = vmatpush1.bf16.msra.mxu0 %v435
  %1664 = vmatprep.mubr.bf16.mxu0 %v1586
  %1665 = vmatmul.mubr.bf16.gmra.mrb[0].mxu0 %v1570
  %v1666 = vpop.f32.mrb[0].mxu0
  %v1667 = vadd.f32 0.0, %v1666
  %v1668 = vpop.f32.mrb[0].mxu0
  %v1669 = vpop.f32.mrb[0].mxu0
  %v1670 = vadd.f32 0.0, %v1669
  %v1671 = vpop.f32.mrb[0].mxu0
  %1672 = vmatprep.mubr.bf16.mxu0 %v1590
  %1673 = vmatmul.mubr.bf16.gmra.mrb[0].mxu0 %v1574
  %v1674 = vpop.f32.mrb[0].mxu0
  %v1675 = vadd.f32 0.0, %v1674
  %v1676 = vpop.f32.mrb[0].mxu0
  %v1677 = vpop.f32.mrb[0].mxu0
  %v1678 = vadd.f32 0.0, %v1677
  %v1679 = vpop.f32.mrb[0].mxu0
  %1680 = vmatprep.mubr.bf16.mxu0 %v1594
  %1681 = vmatmul.mubr.bf16.gmra.mrb[0].mxu0 %v1578
  %v1682 = vpop.f32.mrb[0].mxu0
  %v1683 = vadd.f32 0.0, %v1682
  %v1684 = vpop.f32.mrb[0].mxu0
  %v1685 = vpop.f32.mrb[0].mxu0
  %v1686 = vadd.f32 0.0, %v1685
  %v1687 = vpop.f32.mrb[0].mxu0
  %1688 = vmatprep.mubr.bf16.mxu0 %v1598
  %1689 = vmatmul.mubr.bf16.gmra.mrb[0].mxu0 %v1582
  %v1690 = vpop.f32.mrb[0].mxu0
  %v1691 = vadd.f32 0.0, %v1690
  %v1692 = vpop.f32.mrb[0].mxu0
  %v1693 = vpop.f32.mrb[0].mxu0
  %v1694 = vadd.f32 0.0, %v1693
  %v1695 = vpop.f32.mrb[0].mxu0
  %1696 = vdwg.mxu0
  %1697 = vmatprep.subr.bf16.mxu0 0
  %1698 = vmatpush1.bf16.msra.mxu0 %v436
  %1699 = vmatprep.subr.bf16.mxu0 0
  %1700 = vmatpush1.bf16.msra.mxu0 %v437
  %1701 = vmatprep.subr.bf16.mxu0 0
  %1702 = vmatpush1.bf16.msra.mxu0 %v438
  %1703 = vmatprep.subr.bf16.mxu0 0
  %1704 = vmatpush1.bf16.msra.mxu0 %v439
  %1705 = vmatprep.subr.bf16.mxu0 0
  %1706 = vmatpush1.bf16.msra.mxu0 %v440
  %1707 = vmatprep.subr.bf16.mxu0 0
  %1708 = vmatpush1.bf16.msra.mxu0 %v441
  %1709 = vmatprep.subr.bf16.mxu0 0
  %1710 = vmatpush1.bf16.msra.mxu0 %v442
  %1711 = vmatprep.subr.bf16.mxu0 0
  %1712 = vmatpush1.bf16.msra.mxu0 %v443
  %1713 = vmatprep.subr.bf16.mxu0 0
  %1714 = vmatpush1.bf16.msra.mxu0 %v444
  %1715 = vmatprep.subr.bf16.mxu0 0
  %1716 = vmatpush1.bf16.msra.mxu0 %v445
  %1717 = vmatprep.subr.bf16.mxu0 0
  %1718 = vmatpush1.bf16.msra.mxu0 %v446
  %1719 = vmatprep.subr.bf16.mxu0 0
  %1720 = vmatpush1.bf16.msra.mxu0 %v447
  %1721 = vmatprep.subr.bf16.mxu0 0
  %1722 = vmatpush1.bf16.msra.mxu0 %v448
  %1723 = vmatprep.subr.bf16.mxu0 0
  %1724 = vmatpush1.bf16.msra.mxu0 %v449
  %1725 = vmatprep.subr.bf16.mxu0 0
  %1726 = vmatpush1.bf16.msra.mxu0 %v450
  %1727 = vmatprep.subr.bf16.mxu0 0
  %1728 = vmatpush1.bf16.msra.mxu0 %v451
  %1729 = vmatprep.mubr.bf16.mxu0 %v1618
  %1730 = vmatmul.mubr.bf16.gmra.mrb[0].mxu0 %v1602
  %v1731 = vpop.f32.mrb[0].mxu0
  %v1732 = vadd.f32 %v1667, %v1731
  %v1733 = vpop.f32.mrb[0].mxu0
  %v1734 = vpop.f32.mrb[0].mxu0
  %v1735 = vadd.f32 %v1670, %v1734
  %v1736 = vpop.f32.mrb[0].mxu0
  %1737 = vmatprep.mubr.bf16.mxu0 %v1622
  %1738 = vmatmul.mubr.bf16.gmra.mrb[0].mxu0 %v1606
  %v1739 = vpop.f32.mrb[0].mxu0
  %v1740 = vadd.f32 %v1675, %v1739
  %v1741 = vpop.f32.mrb[0].mxu0
  %v1742 = vpop.f32.mrb[0].mxu0
  %v1743 = vadd.f32 %v1678, %v1742
  %v1744 = vpop.f32.mrb[0].mxu0
  %1745 = vmatprep.mubr.bf16.mxu0 %v1626
  %1746 = vmatmul.mubr.bf16.gmra.mrb[0].mxu0 %v1610
  %v1747 = vpop.f32.mrb[0].mxu0
  %v1748 = vadd.f32 %v1683, %v1747
  %v1749 = vpop.f32.mrb[0].mxu0
  %v1750 = vpop.f32.mrb[0].mxu0
  %v1751 = vadd.f32 %v1686, %v1750
  %v1752 = vpop.f32.mrb[0].mxu0
  %1753 = vmatprep.mubr.bf16.mxu0 %v1630
  %1754 = vmatmul.mubr.bf16.gmra.mrb[0].mxu0 %v1614
  %v1755 = vpop.f32.mrb[0].mxu0
  %v1756 = vadd.f32 %v1691, %v1755
  %v1757 = vpop.f32.mrb[0].mxu0
  %v1758 = vpop.f32.mrb[0].mxu0
  %v1759 = vadd.f32 %v1694, %v1758
  %v1760 = vpop.f32.mrb[0].mxu0
  %1761 = vdwg.mxu0
  %v1762 = vadd.f32 %v295, %v1732
  %v1763 = vadd.f32 %v296, %v1735
  %v1764 = vadd.f32 %v297, %v1740
  %v1765 = vadd.f32 %v298, %v1743
  %v1766 = vadd.f32 %v299, %v1748
  %v1767 = vadd.f32 %v300, %v1751
  %v1768 = vadd.f32 %v301, %v1756
  %v1769 = vadd.f32 %v302, %v1759
  %v1770 = vld [vmem:[%s4 + $0x4] sm:$0x1]
  %v1771 = vld [vmem:[%s4 + $0x5] sm:$0x1]
  %1772 = vadd.xlane.f32.xlu0 %v1762
  %v1773 = vpop.xlane.xlu0 %1772
  %1774 = vadd.xlane.f32.xlu0 %v1763
  %v1775 = vpop.xlane.xlu0 %1774
  %1776 = vadd.xlane.f32.xlu0 %v1764
  %v1777 = vpop.xlane.xlu0 %1776
  %1778 = vadd.xlane.f32.xlu0 %v1765
  %v1779 = vpop.xlane.xlu0 %1778
  %1780 = vadd.xlane.f32.xlu0 %v1766
  %v1781 = vpop.xlane.xlu0 %1780
  %1782 = vadd.xlane.f32.xlu0 %v1767
  %v1783 = vpop.xlane.xlu0 %1782
  %1784 = vadd.xlane.f32.xlu0 %v1768
  %v1785 = vpop.xlane.xlu0 %1784
  %1786 = vadd.xlane.f32.xlu0 %v1769
  %v1787 = vpop.xlane.xlu0 %1786
  %v1788 = vrcp.pop 128.0
  %v1789 = vmul.f32 %v1773, %v1788
  %v1790 = vmul.f32 %v1775, %v1788
  %v1791 = vmul.f32 %v1777, %v1788
  %v1792 = vmul.f32 %v1779, %v1788
  %v1793 = vmul.f32 %v1781, %v1788
  %v1794 = vmul.f32 %v1783, %v1788
  %v1795 = vmul.f32 %v1785, %v1788
  %v1796 = vmul.f32 %v1787, %v1788
  %v1797 = vsub.f32 %v1762, %v1789
  %v1798 = vsub.f32 %v1763, %v1790
  %v1799 = vsub.f32 %v1764, %v1791
  %v1800 = vsub.f32 %v1765, %v1792
  %v1801 = vsub.f32 %v1766, %v1793
  %v1802 = vsub.f32 %v1767, %v1794
  %v1803 = vsub.f32 %v1768, %v1795
  %v1804 = vsub.f32 %v1769, %v1796
  %v1805 = vmul.f32 %v1797, %v1797
  %v1806 = vmul.f32 %v1798, %v1798
  %v1807 = vmul.f32 %v1799, %v1799
  %v1808 = vmul.f32 %v1800, %v1800
  %v1809 = vmul.f32 %v1801, %v1801
  %v1810 = vmul.f32 %v1802, %v1802
  %v1811 = vmul.f32 %v1803, %v1803
  %v1812 = vmul.f32 %v1804, %v1804
  %1813 = vadd.xlane.f32.xlu0 %v1805
  %v1814 = vpop.xlane.xlu0 %1813
  %1815 = vadd.xlane.f32.xlu0 %v1806
  %v1816 = vpop.xlane.xlu0 %1815
  %1817 = vadd.xlane.f32.xlu0 %v1807
  %v1818 = vpop.xlane.xlu0 %1817
  %1819 = vadd.xlane.f32.xlu0 %v1808
  %v1820 = vpop.xlane.xlu0 %1819
  %1821 = vadd.xlane.f32.xlu0 %v1809
  %v1822 = vpop.xlane.xlu0 %1821
  %1823 = vadd.xlane.f32.xlu0 %v1810
  %v1824 = vpop.xlane.xlu0 %1823
  %1825 = vadd.xlane.f32.xlu0 %v1811
  %v1826 = vpop.xlane.xlu0 %1825
  %1827 = vadd.xlane.f32.xlu0 %v1812
  %v1828 = vpop.xlane.xlu0 %1827
  %v1829 = vmul.f32 %v1814, %v1788
  %v1830 = vmul.f32 %v1816, %v1788
  %v1831 = vmul.f32 %v1818, %v1788
  %v1832 = vmul.f32 %v1820, %v1788
  %v1833 = vmul.f32 %v1822, %v1788
  %v1834 = vmul.f32 %v1824, %v1788
  %v1835 = vmul.f32 %v1826, %v1788
  %v1836 = vmul.f32 %v1828, %v1788
  %v1837 = vadd.f32 %v1829, 1e-05
  %v1838 = vadd.f32 %v1830, 1e-05
  %v1839 = vadd.f32 %v1831, 1e-05
  %v1840 = vadd.f32 %v1832, 1e-05
  %v1841 = vadd.f32 %v1833, 1e-05
  %v1842 = vadd.f32 %v1834, 1e-05
  %v1843 = vadd.f32 %v1835, 1e-05
  %v1844 = vadd.f32 %v1836, 1e-05
  %v1845 = vrsqrt.pop %v1837
  %v1846 = vrsqrt.pop %v1838
  %v1847 = vrsqrt.pop %v1839
  %v1848 = vrsqrt.pop %v1840
  %v1849 = vrsqrt.pop %v1841
  %v1850 = vrsqrt.pop %v1842
  %v1851 = vrsqrt.pop %v1843
  %v1852 = vrsqrt.pop %v1844
  %v1853 = vmul.f32 %v1797, %v1845
  %v1854 = vmul.f32 %v1798, %v1846
  %v1855 = vmul.f32 %v1799, %v1847
  %v1856 = vmul.f32 %v1800, %v1848
  %v1857 = vmul.f32 %v1801, %v1849
  %v1858 = vmul.f32 %v1802, %v1850
  %v1859 = vmul.f32 %v1803, %v1851
  %v1860 = vmul.f32 %v1804, %v1852
  %v1861 = vlaneseq
  %v1862 = vshrl.u32 %v1861, 7
  %v1863 = vsub.s32 0, %v1862
  %v1864 = vrot.slane %v1770, %v1863
  %v1865 = vmul.f32 %v1853, %v1864
  %v1866 = vmul.f32 %v1854, %v1864
  %v1867 = vmul.f32 %v1855, %v1864
  %v1868 = vmul.f32 %v1856, %v1864
  %v1869 = vmul.f32 %v1857, %v1864
  %v1870 = vmul.f32 %v1858, %v1864
  %v1871 = vmul.f32 %v1859, %v1864
  %v1872 = vmul.f32 %v1860, %v1864
  %v1873 = vlaneseq
  %v1874 = vshrl.u32 %v1873, 7
  %v1875 = vsub.s32 0, %v1874
  %v1876 = vrot.slane %v1771, %v1875
  %v1877 = vadd.f32 %v1865, %v1876
  %v1878 = vadd.f32 %v1866, %v1876
  %v1879 = vadd.f32 %v1867, %v1876
  %v1880 = vadd.f32 %v1868, %v1876
  %v1881 = vadd.f32 %v1869, %v1876
  %v1882 = vadd.f32 %v1870, %v1876
  %v1883 = vadd.f32 %v1871, %v1876
  %v1884 = vadd.f32 %v1872, %v1876
  %v1885 = vpack.c.bf16 %v1878, %v1877
  %v1886 = vpack.c.bf16 %v1880, %v1879
  %v1887 = vpack.c.bf16 %v1882, %v1881
  %v1888 = vpack.c.bf16 %v1884, %v1883
  %v1889 = vld [vmem:[%s3] sm:$0xf]
  %v1890 = vld [vmem:[%s3 + $0x4] sm:$0xf]
  %v1891 = vld [vmem:[%s3 + $0x8] sm:$0xf]
  %v1892 = vld [vmem:[%s3 + $0xc] sm:$0xf]
  %v1893 = vld [vmem:[%s3 + $0x10] sm:$0xf]
  %v1894 = vld [vmem:[%s3 + $0x14] sm:$0xf]
  %v1895 = vld [vmem:[%s3 + $0x18] sm:$0xf]
  %v1896 = vld [vmem:[%s3 + $0x1c] sm:$0xf]
  %v1897 = vld [vmem:[%s3 + $0x20] sm:$0xf]
  %v1898 = vld [vmem:[%s3 + $0x24] sm:$0xf]
  %v1899 = vld [vmem:[%s3 + $0x28] sm:$0xf]
  %v1900 = vld [vmem:[%s3 + $0x2c] sm:$0xf]
  %v1901 = vld [vmem:[%s3 + $0x30] sm:$0xf]
  %v1902 = vld [vmem:[%s3 + $0x34] sm:$0xf]
  %v1903 = vld [vmem:[%s3 + $0x38] sm:$0xf]
  %v1904 = vld [vmem:[%s3 + $0x3c] sm:$0xf]
  %v1905 = vld [vmem:[%s4 + $0x3] sm:$0x1]
  %v1906 = vlaneseq
  %v1907 = vshrl.u32 %v1906, 7
  %v1908 = vsub.s32 0, %v1907
  %v1909 = vrot.slane %v1905, %v1908
  %v1926 = vunpack.c.l.b16 %v1889
  %v1927 = vunpack.c.l.b16 %v1890
  %v1928 = vunpack.c.l.b16 %v1891
  %v1929 = vunpack.c.l.b16 %v1892
  %v1930 = vunpack.c.l.b16 %v1893
  %v1931 = vunpack.c.l.b16 %v1894
  %v1932 = vunpack.c.l.b16 %v1895
  %v1933 = vunpack.c.l.b16 %v1896
  %v1934 = vunpack.c.l.b16 %v1897
  %v1935 = vunpack.c.l.b16 %v1898
  %v1936 = vunpack.c.l.b16 %v1899
  %v1937 = vunpack.c.l.b16 %v1900
  %v1938 = vunpack.c.l.b16 %v1901
  %v1939 = vunpack.c.l.b16 %v1902
  %v1940 = vunpack.c.l.b16 %v1903
  %v1941 = vunpack.c.l.b16 %v1904
  %v1942 = vpack.c.b16 %v1927, %v1926
  %v1943 = vpack.c.b16 %v1929, %v1928
  %v1944 = vpack.c.b16 %v1931, %v1930
  %v1945 = vpack.c.b16 %v1933, %v1932
  %v1946 = vpack.c.b16 %v1935, %v1934
  %v1947 = vpack.c.b16 %v1937, %v1936
  %v1948 = vpack.c.b16 %v1939, %v1938
  %v1949 = vpack.c.b16 %v1941, %v1940
  %1958 = vmatprep.subr.bf16.mxu0 0
  %1959 = vmatpush1.bf16.msra.mxu0 %v1942
  %1960 = vmatprep.subr.bf16.mxu0 0
  %1961 = vmatpush1.bf16.msra.mxu0 %v1943
  %1962 = vmatprep.subr.bf16.mxu0 0
  %1963 = vmatpush1.bf16.msra.mxu0 %v1944
  %1964 = vmatprep.subr.bf16.mxu0 0
  %1965 = vmatpush1.bf16.msra.mxu0 %v1945
  %1966 = vmatprep.subr.bf16.mxu0 0
  %1967 = vmatpush1.bf16.msra.mxu0 %v1946
  %1968 = vmatprep.subr.bf16.mxu0 0
  %1969 = vmatpush1.bf16.msra.mxu0 %v1947
  %1970 = vmatprep.subr.bf16.mxu0 0
  %1971 = vmatpush1.bf16.msra.mxu0 %v1948
  %1972 = vmatprep.subr.bf16.mxu0 0
  %1973 = vmatpush1.bf16.msra.mxu0 %v1949
  %1974 = vmatprep.subr.bf16.mxu0 0
  %1975 = vmatpush1.bf16.msra.mxu0 0
  %1976 = vmatprep.subr.bf16.mxu0 0
  %1977 = vmatpush1.bf16.msra.mxu0 0
  %1978 = vmatprep.subr.bf16.mxu0 0
  %1979 = vmatpush1.bf16.msra.mxu0 0
  %1980 = vmatprep.subr.bf16.mxu0 0
  %1981 = vmatpush1.bf16.msra.mxu0 0
  %1982 = vmatprep.subr.bf16.mxu0 0
  %1983 = vmatpush1.bf16.msra.mxu0 0
  %1984 = vmatprep.subr.bf16.mxu0 0
  %1985 = vmatpush1.bf16.msra.mxu0 0
  %1986 = vmatprep.subr.bf16.mxu0 0
  %1987 = vmatpush1.bf16.msra.mxu0 0
  %1988 = vmatprep.subr.bf16.mxu0 0
  %1989 = vmatpush1.bf16.msra.mxu0 0
  %1990 = vmatprep.mubr.bf16.mxu0 0
  %1991 = vmatmul.mubr.bf16.gmra.mrb[0].mxu0 %v1885
  %v1992 = vpop.f32.mrb[0].mxu0
  %v1993 = vadd.f32 %v1909, %v1992
  %v1994 = vpop.f32.mrb[0].mxu0
  %v1995 = vpop.f32.mrb[0].mxu0
  %v1996 = vadd.f32 %v1909, %v1995
  %v1997 = vpop.f32.mrb[0].mxu0
  %1998 = vmatprep.mubr.bf16.mxu0 0
  %1999 = vmatmul.mubr.bf16.gmra.mrb[0].mxu0 %v1886
  %v2000 = vpop.f32.mrb[0].mxu0
  %v2001 = vadd.f32 %v1909, %v2000
  %v2002 = vpop.f32.mrb[0].mxu0
  %v2003 = vpop.f32.mrb[0].mxu0
  %v2004 = vadd.f32 %v1909, %v2003
  %v2005 = vpop.f32.mrb[0].mxu0
  %2006 = vmatprep.mubr.bf16.mxu0 0
  %2007 = vmatmul.mubr.bf16.gmra.mrb[0].mxu0 %v1887
  %v2008 = vpop.f32.mrb[0].mxu0
  %v2009 = vadd.f32 %v1909, %v2008
  %v2010 = vpop.f32.mrb[0].mxu0
  %v2011 = vpop.f32.mrb[0].mxu0
  %v2012 = vadd.f32 %v1909, %v2011
  %v2013 = vpop.f32.mrb[0].mxu0
  %2014 = vmatprep.mubr.bf16.mxu0 0
  %2015 = vmatmul.mubr.bf16.gmra.mrb[0].mxu0 %v1888
  %v2016 = vpop.f32.mrb[0].mxu0
  %v2017 = vadd.f32 %v1909, %v2016
  %v2018 = vpop.f32.mrb[0].mxu0
  %v2019 = vpop.f32.mrb[0].mxu0
  %v2020 = vadd.f32 %v1909, %v2019
  %v2021 = vpop.f32.mrb[0].mxu0
  %2022 = vdwg.mxu0
  %vm2023 = vcmp.ge.f32.partialorder %v1993, 0.0
  %vm2024 = vcmp.ge.f32.partialorder %v1996, 0.0
  %vm2025 = vcmp.ge.f32.partialorder %v2001, 0.0
  %vm2026 = vcmp.ge.f32.partialorder %v2004, 0.0
  %vm2027 = vcmp.ge.f32.partialorder %v2009, 0.0
  %vm2028 = vcmp.ge.f32.partialorder %v2012, 0.0
  %vm2029 = vcmp.ge.f32.partialorder %v2017, 0.0
  %vm2030 = vcmp.ge.f32.partialorder %v2020, 0.0
  %v2031 = vmul.f32 %v1993, 0.01
  %v2032 = vmul.f32 %v1996, 0.01
  %v2033 = vmul.f32 %v2001, 0.01
  %v2034 = vmul.f32 %v2004, 0.01
  %v2035 = vmul.f32 %v2009, 0.01
  %v2036 = vmul.f32 %v2012, 0.01
  %v2037 = vmul.f32 %v2017, 0.01
  %v2038 = vmul.f32 %v2020, 0.01
  %v2039 = vsel %vm2023, %v1993, %v2031
  %v2040 = vsel %vm2024, %v1996, %v2032
  %v2041 = vsel %vm2025, %v2001, %v2033
  %v2042 = vsel %vm2026, %v2004, %v2034
  %v2043 = vsel %vm2027, %v2009, %v2035
  %v2044 = vsel %vm2028, %v2012, %v2036
  %v2045 = vsel %vm2029, %v2017, %v2037
  %v2046 = vsel %vm2030, %v2020, %v2038
  %v2047 = vadd.f32 %v1877, %v2039
  %v2048 = vadd.f32 %v1878, %v2040
  %v2049 = vadd.f32 %v1879, %v2041
  %v2050 = vadd.f32 %v1880, %v2042
  %v2051 = vadd.f32 %v1881, %v2043
  %v2052 = vadd.f32 %v1882, %v2044
  %v2053 = vadd.f32 %v1883, %v2045
  %v2054 = vadd.f32 %v1884, %v2046
  %v2055 = vld [vmem:[%s4 + $0x6] sm:$0x1]
  %v2056 = vld [vmem:[%s4 + $0x7] sm:$0x1]
  %2057 = vadd.xlane.f32.xlu0 %v2047
  %v2058 = vpop.xlane.xlu0 %2057
  %2059 = vadd.xlane.f32.xlu0 %v2048
  %v2060 = vpop.xlane.xlu0 %2059
  %2061 = vadd.xlane.f32.xlu0 %v2049
  %v2062 = vpop.xlane.xlu0 %2061
  %2063 = vadd.xlane.f32.xlu0 %v2050
  %v2064 = vpop.xlane.xlu0 %2063
  %2065 = vadd.xlane.f32.xlu0 %v2051
  %v2066 = vpop.xlane.xlu0 %2065
  %2067 = vadd.xlane.f32.xlu0 %v2052
  %v2068 = vpop.xlane.xlu0 %2067
  %2069 = vadd.xlane.f32.xlu0 %v2053
  %v2070 = vpop.xlane.xlu0 %2069
  %2071 = vadd.xlane.f32.xlu0 %v2054
  %v2072 = vpop.xlane.xlu0 %2071
  %v2073 = vmul.f32 %v2058, %v1788
  %v2074 = vmul.f32 %v2060, %v1788
  %v2075 = vmul.f32 %v2062, %v1788
  %v2076 = vmul.f32 %v2064, %v1788
  %v2077 = vmul.f32 %v2066, %v1788
  %v2078 = vmul.f32 %v2068, %v1788
  %v2079 = vmul.f32 %v2070, %v1788
  %v2080 = vmul.f32 %v2072, %v1788
  %v2081 = vsub.f32 %v2047, %v2073
  %v2082 = vsub.f32 %v2048, %v2074
  %v2083 = vsub.f32 %v2049, %v2075
  %v2084 = vsub.f32 %v2050, %v2076
  %v2085 = vsub.f32 %v2051, %v2077
  %v2086 = vsub.f32 %v2052, %v2078
  %v2087 = vsub.f32 %v2053, %v2079
  %v2088 = vsub.f32 %v2054, %v2080
  %v2089 = vmul.f32 %v2081, %v2081
  %v2090 = vmul.f32 %v2082, %v2082
  %v2091 = vmul.f32 %v2083, %v2083
  %v2092 = vmul.f32 %v2084, %v2084
  %v2093 = vmul.f32 %v2085, %v2085
  %v2094 = vmul.f32 %v2086, %v2086
  %v2095 = vmul.f32 %v2087, %v2087
  %v2096 = vmul.f32 %v2088, %v2088
  %2097 = vadd.xlane.f32.xlu0 %v2089
  %v2098 = vpop.xlane.xlu0 %2097
  %2099 = vadd.xlane.f32.xlu0 %v2090
  %v2100 = vpop.xlane.xlu0 %2099
  %2101 = vadd.xlane.f32.xlu0 %v2091
  %v2102 = vpop.xlane.xlu0 %2101
  %2103 = vadd.xlane.f32.xlu0 %v2092
  %v2104 = vpop.xlane.xlu0 %2103
  %2105 = vadd.xlane.f32.xlu0 %v2093
  %v2106 = vpop.xlane.xlu0 %2105
  %2107 = vadd.xlane.f32.xlu0 %v2094
  %v2108 = vpop.xlane.xlu0 %2107
  %2109 = vadd.xlane.f32.xlu0 %v2095
  %v2110 = vpop.xlane.xlu0 %2109
  %2111 = vadd.xlane.f32.xlu0 %v2096
  %v2112 = vpop.xlane.xlu0 %2111
  %v2113 = vmul.f32 %v2098, %v1788
  %v2114 = vmul.f32 %v2100, %v1788
  %v2115 = vmul.f32 %v2102, %v1788
  %v2116 = vmul.f32 %v2104, %v1788
  %v2117 = vmul.f32 %v2106, %v1788
  %v2118 = vmul.f32 %v2108, %v1788
  %v2119 = vmul.f32 %v2110, %v1788
  %v2120 = vmul.f32 %v2112, %v1788
  %v2121 = vadd.f32 %v2113, 1e-05
  %v2122 = vadd.f32 %v2114, 1e-05
  %v2123 = vadd.f32 %v2115, 1e-05
  %v2124 = vadd.f32 %v2116, 1e-05
  %v2125 = vadd.f32 %v2117, 1e-05
  %v2126 = vadd.f32 %v2118, 1e-05
  %v2127 = vadd.f32 %v2119, 1e-05
  %v2128 = vadd.f32 %v2120, 1e-05
  %v2129 = vrsqrt.pop %v2121
  %v2130 = vrsqrt.pop %v2122
  %v2131 = vrsqrt.pop %v2123
  %v2132 = vrsqrt.pop %v2124
  %v2133 = vrsqrt.pop %v2125
  %v2134 = vrsqrt.pop %v2126
  %v2135 = vrsqrt.pop %v2127
  %v2136 = vrsqrt.pop %v2128
  %v2137 = vmul.f32 %v2081, %v2129
  %v2138 = vmul.f32 %v2082, %v2130
  %v2139 = vmul.f32 %v2083, %v2131
  %v2140 = vmul.f32 %v2084, %v2132
  %v2141 = vmul.f32 %v2085, %v2133
  %v2142 = vmul.f32 %v2086, %v2134
  %v2143 = vmul.f32 %v2087, %v2135
  %v2144 = vmul.f32 %v2088, %v2136
  %v2145 = vlaneseq
  %v2146 = vshrl.u32 %v2145, 7
  %v2147 = vsub.s32 0, %v2146
  %v2148 = vrot.slane %v2055, %v2147
  %v2149 = vmul.f32 %v2137, %v2148
  %v2150 = vmul.f32 %v2138, %v2148
  %v2151 = vmul.f32 %v2139, %v2148
  %v2152 = vmul.f32 %v2140, %v2148
  %v2153 = vmul.f32 %v2141, %v2148
  %v2154 = vmul.f32 %v2142, %v2148
  %v2155 = vmul.f32 %v2143, %v2148
  %v2156 = vmul.f32 %v2144, %v2148
  %v2157 = vlaneseq
  %v2158 = vshrl.u32 %v2157, 7
  %v2159 = vsub.s32 0, %v2158
  %v2160 = vrot.slane %v2056, %v2159
  %v2161 = vadd.f32 %v2149, %v2160
  %v2162 = vadd.f32 %v2150, %v2160
  %v2163 = vadd.f32 %v2151, %v2160
  %v2164 = vadd.f32 %v2152, %v2160
  %v2165 = vadd.f32 %v2153, %v2160
  %v2166 = vadd.f32 %v2154, %v2160
  %v2167 = vadd.f32 %v2155, %v2160
  %v2168 = vadd.f32 %v2156, %v2160
  %v2169 = vpack.c.bf16 %v2162, %v2161
  %v2170 = vpack.c.bf16 %v2164, %v2163
  %v2171 = vpack.c.bf16 %v2166, %v2165
  %v2172 = vpack.c.bf16 %v2168, %v2167
  %v2177 = vunpack.c.l.b16 %v2169
  %v2178 = vunpack.c.h.b16 %v2169
  %v2179 = vunpack.c.l.b16 %v2170
  %v2180 = vunpack.c.h.b16 %v2170
  %v2181 = vunpack.c.l.b16 %v2171
  %v2182 = vunpack.c.h.b16 %v2171
  %v2183 = vunpack.c.l.b16 %v2172
  %v2184 = vunpack.c.h.b16 %v2172
  %v2185 = vpack.c.b16 %v2177, %v2177
  %v2186 = vpack.c.b16 %v2178, %v2178
  %v2187 = vpack.c.b16 %v2179, %v2179
  %v2188 = vpack.c.b16 %v2180, %v2180
  %v2189 = vpack.c.b16 %v2181, %v2181
  %v2190 = vpack.c.b16 %v2182, %v2182
  %v2191 = vpack.c.b16 %v2183, %v2183
  %v2192 = vpack.c.b16 %v2184, %v2184
  %2201 = vst [vmem:[%s7] sm:$0xf] %v2185
  %2202 = vst [vmem:[%s7 + $0x4] sm:$0xf] %v2186
  %2203 = vst [vmem:[%s7 + $0x8] sm:$0xf] %v2187
  %2204 = vst [vmem:[%s7 + $0xc] sm:$0xf] %v2188
  %2205 = vst [vmem:[%s7 + $0x10] sm:$0xf] %v2189
  %2206 = vst [vmem:[%s7 + $0x14] sm:$0xf] %v2190
  %2207 = vst [vmem:[%s7 + $0x18] sm:$0xf] %v2191
  %2208 = vst [vmem:[%s7 + $0x1c] sm:$0xf] %v2192
  // Predicated region
  $region30: #{attention_mapper_forward.1} parent=0 // pred_check
    _
  $region31: #{attention_mapper_forward.1} parent=0 // pred_check_branch
    %2210 = sbr.rel (0) target = $region33
  $region32: #{attention_mapper_forward.1} parent=0 // pred_region
    _
  $region33: #{attention_mapper_forward.1} parent=0 // pred_fallthru
    _
  // Predicated region
  $region34: #{attention_mapper_forward.1} parent=0 // pred_check
    _
  $region35: #{attention_mapper_forward.1} parent=0 // pred_check_branch
    %2212 = sbr.rel (0) target = $region37
  $region36: #{attention_mapper_forward.1} parent=0 // pred_region
    _
  $region37: #{attention_mapper_forward.1} parent=0 // pred_fallthru
    _

</llo_original>
